<compile_context>
chip_gen: v7x
topology: tpu7x:2x2x1
jax: 0.10.0
libtpu: 0.0.40
codegen_flags: <defaults>
</compile_context>

<pallas_src>
import functools

import jax
import jax.numpy as jnp
from jax import lax
from jax.experimental import pallas as pl
from jax.experimental.pallas import tpu as pltpu

# ---- model hyper-parameters (small, consistent with the module) -------------
EMBEDDING_DIM = 32
DCT_HIDDEN_DIM = 32      # bidirectional -> 16 per direction
TIME_HIDDEN_DIM = 32     # bidirectional -> 16 per direction
VOCAB_SIZE = 100
VOCAB_PAD = 128          # vocab rows padded to one full lane group
ACTION_SIZE = 8
BATCH_SIZE = 2
SEQ_LEN = 8
BATCH_PAD = 8            # per-step M rows padded to a full sublane tile

_H = DCT_HIDDEN_DIM // 2          # per-direction hidden size (16)
_IFO_GATES = (0, 1, 3)            # gates that use sigmoid (i, f, o)

_VMEM = pl.BlockSpec(memory_space=pltpu.MemorySpace.VMEM)


# ---- fused Pallas kernel -----------------------------------------------------
def _make_fused_kernel(T, B, BP, G, H, E, VP):
    """Fused embedding-gather + bi-LSTM(last step) + Linear + log_softmax.

    Ref layout (G = packed LSTMs, H = per-direction hidden = 16, HG = G*H):
      ids_ref  : SMEM (G*T*B,) int32, ids[g*T*B + t*B + b]   [scalar prefetch]
      emb_ref  : VMEM (VP, E) f32       vocab-padded embedding table
      wih_ref  : VMEM (G*E, 8*HG) bf16  packed input->gates, cols
                                        [fwd: i|f|g|o | bwd: i|f|g|o],
                                        i/f/o columns pre-scaled by 0.5
      whh_ref  : VMEM (HG, 4*HG) bf16   packed hidden->gates (fwd only),
                                        i/f/o columns pre-scaled by 0.5
      b_ref    : VMEM (1, 8*HG) f32     b_ih + b_hh folded, same packing/scale
      wof_ref  : VMEM (HG, A) bf16      head weight, forward-feature rows
      wob_ref  : VMEM (HG, A) bf16      head weight, backward-feature rows
      bout_ref : VMEM (1, A) f32
      out_ref  : VMEM (B, A) f32        log_softmax scores
      oh_scr   : VMEM (T*BP, VP) f32    one-hot gather scratch
    """
    HG = G * H
    G4 = 4 * HG

    def kernel(ids_ref, emb_ref, wih_ref, whh_ref, b_ref,
               wof_ref, wob_ref, bout_ref, out_ref, oh_scr):
        lane = lax.broadcasted_iota(jnp.int32, (1, VP), 1)
        wih = wih_ref[...]
        whh = whh_ref[...]

        # ---- fused embedding lookup + hoisted input projection (prologue) ---
        # One-hot rows are built from SMEM scalar ids and gathered with the
        # (otherwise idle) MXU; pad rows (b >= B) stay zero.
        gx = None
        for g in range(G):
            oh_scr[...] = jnp.zeros_like(oh_scr)
            for t in range(T):
                for b in range(B):
                    tok = ids_ref[g * T * B + t * B + b]
                    oh_scr[pl.ds(t * BP + b, 1), :] = (
                        lane == tok).astype(jnp.float32)
            xg = jnp.dot(oh_scr[...], emb_ref[...],
                         preferred_element_type=jnp.float32)      # (T*BP, E)
            pg = jnp.dot(xg.astype(jnp.bfloat16),
                         wih[g * E:(g + 1) * E, :],
                         preferred_element_type=jnp.float32)      # (T*BP, 8HG)
            gx = pg if gx is None else gx + pg
        gx = gx + b_ref[...]
        gxf = gx[:, :G4]          # forward-gate lanes, sliced ONCE (hoisted)

        def cell(gates, c_prev):
            # ONE full-width tanh per step; i/f/o recovered via the
            # sigmoid(x) = 0.5*(tanh(x/2)+1) identity (weights pre-scaled).
            th = jnp.tanh(gates)
            ig = 0.5 * (th[:, 0 * HG:1 * HG] + 1.0)
            fg = 0.5 * (th[:, 1 * HG:2 * HG] + 1.0)
            gg = th[:, 2 * HG:3 * HG]
            og = 0.5 * (th[:, 3 * HG:4 * HG] + 1.0)
            c = fg * c_prev + ig * gg
            return og * jnp.tanh(c), c

        h = jnp.zeros((BP, HG), jnp.float32)
        c = jnp.zeros((BP, HG), jnp.float32)

        # forward recurrence, statically unrolled; per-step slices are full
        # 8-sublane tiles and the only matmul is h @ whh in bf16.
        for t in range(T):
            gates = gxf[t * BP:(t + 1) * BP, :] + jnp.dot(
                h.astype(jnp.bfloat16), whh,
                preferred_element_type=jnp.float32)
            h, c = cell(gates, c)

        # backward direction at the last output position: single step from the
        # zero state on x[T-1]; h0 @ whh_b == 0 so only gx contributes.
        gates_b = gx[(T - 1) * BP:T * BP, G4:2 * G4]
        h_b, _ = cell(gates_b, jnp.zeros((BP, HG), jnp.float32))

        # fused head: two dots (no lane concat) + numerically stable
        # log_softmax; only the B valid rows are stored.
        logits = (jnp.dot(h.astype(jnp.bfloat16), wof_ref[...],
                          preferred_element_type=jnp.float32)
                  + jnp.dot(h_b.astype(jnp.bfloat16), wob_ref[...],
                            preferred_element_type=jnp.float32)
                  + bout_ref[...])
        m = jnp.max(logits, axis=1, keepdims=True)
        z = logits - m
        ls = z - jnp.log(jnp.sum(jnp.exp(z), axis=1, keepdims=True))
        out_ref[...] = ls[:B, :]

    return kernel


def fused_bilstm_head(ids, emb_pad, packed, w_f, w_b, bout, *, T, B, G):
    A = w_f.shape[1]
    VP, E = emb_pad.shape
    H = packed["whh"].shape[0] // G
    grid_spec = pltpu.PrefetchScalarGridSpec(
        num_scalar_prefetch=1,            # token ids -> SMEM
        grid=(1,),
        in_specs=[_VMEM] * 7,
        out_specs=_VMEM,
        scratch_shapes=[pltpu.VMEM((T * BATCH_PAD, VP), jnp.float32)],
    )
    return pl.pallas_call(
        _make_fused_kernel(T, B, BATCH_PAD, G, H, E, VP),
        grid_spec=grid_spec,
        out_shape=jax.ShapeDtypeStruct((B, A), jnp.float32),
    )(ids, emb_pad, packed["wih"], packed["whh"], packed["b"], w_f, w_b, bout)


# ---- deterministic parameter construction -----------------------------------
def _uniform(key, shape, bound):
    return jax.random.uniform(key, shape, jnp.float32, -bound, bound)


def make_lstm_params(key, input_dim, hidden_half):
    """Logical (per-direction) LSTM params, PyTorch i|f|g|o gate order,
    pre-transposed to (in, 4H)."""
    k = jax.random.split(key, 8)
    H = hidden_half
    bound = 1.0 / jnp.sqrt(H)
    wih_f = _uniform(k[0], (input_dim, 4 * H), bound)
    whh_f = _uniform(k[1], (H, 4 * H), bound)
    b_f = _uniform(k[2], (1, 4 * H), bound) + _uniform(k[3], (1, 4 * H), bound)
    wih_b = _uniform(k[4], (input_dim, 4 * H), bound)
    whh_b = _uniform(k[5], (H, 4 * H), bound)
    b_b = _uniform(k[6], (1, 4 * H), bound) + _uniform(k[7], (1, 4 * H), bound)
    return dict(wih_f=wih_f, whh_f=whh_f, b_f=b_f,
                wih_b=wih_b, whh_b=whh_b, b_b=b_b)


def pack_lstm_group(lstms, E, H):
    """Column-pack G bi-LSTMs into one lane-dense weight set (host-side, once).

    Packed gate column (gate k, lstm g, unit j) = k*G*H + g*H + j, forward
    block first then backward block.  whh contains only the forward direction.
    i/f/o columns are pre-scaled by 0.5 (sigmoid-via-tanh); weights are cast
    to bf16 for single-pass MXU use, bias stays f32.
    """
    G = len(lstms)
    HG = G * H
    wih = jnp.zeros((G * E, 8 * HG), jnp.float32)
    whh = jnp.zeros((HG, 4 * HG), jnp.float32)
    b = jnp.zeros((1, 8 * HG), jnp.float32)
    for g, p in enumerate(lstms):
        rowsE = slice(g * E, (g + 1) * E)
        rowsH = slice(g * H, (g + 1) * H)
        for k in range(4):  # gates i, f, g, o
            src = slice(k * H, (k + 1) * H)
            dst_f = slice(k * HG + g * H, k * HG + (g + 1) * H)
            dst_b = slice(4 * HG + k * HG + g * H, 4 * HG + k * HG + (g + 1) * H)
            s = 0.5 if k in _IFO_GATES else 1.0
            wih = wih.at[rowsE, dst_f].set(s * p["wih_f"][:, src])
            wih = wih.at[rowsE, dst_b].set(s * p["wih_b"][:, src])
            whh = whh.at[rowsH, dst_f].set(s * p["whh_f"][:, src])
            b = b.at[:, dst_f].set(s * p["b_f"][:, src])
            b = b.at[:, dst_b].set(s * p["b_b"][:, src])
    return dict(wih=wih.astype(jnp.bfloat16),
                whh=whh.astype(jnp.bfloat16),
                b=b)


def split_head_weight(w, G, H):
    """Split the head weight rows (original order [lstm g: fwd|bwd]) into the
    kernel's forward-feature and backward-feature blocks, bf16."""
    wf = jnp.concatenate([w[g * 2 * H:g * 2 * H + H, :] for g in range(G)], 0)
    wb = jnp.concatenate([w[g * 2 * H + H:(g + 1) * 2 * H, :]
                          for g in range(G)], 0)
    return wf.astype(jnp.bfloat16), wb.astype(jnp.bfloat16)


def make_params(key):
    keys = jax.random.split(key, 8)
    p = {}
    p["embedding"] = jax.random.normal(
        keys[0], (VOCAB_SIZE, EMBEDDING_DIM), jnp.float32)
    # DCT branch
    p["dct_lstm"] = make_lstm_params(keys[1], EMBEDDING_DIM, _H)
    bd = 1.0 / jnp.sqrt(DCT_HIDDEN_DIM)
    p["dct_w"] = _uniform(keys[2], (DCT_HIDDEN_DIM, ACTION_SIZE), bd)
    p["dct_b"] = _uniform(keys[3], (1, ACTION_SIZE), bd)
    # Time branch (left / right encoders)
    p["left_lstm"] = make_lstm_params(keys[4], EMBEDDING_DIM, _H)
    p["right_lstm"] = make_lstm_params(keys[5], EMBEDDING_DIM, _H)
    bt = 1.0 / jnp.sqrt(2 * TIME_HIDDEN_DIM)
    p["time_w"] = _uniform(keys[6], (2 * TIME_HIDDEN_DIM, ACTION_SIZE), bt)
    p["time_b"] = _uniform(keys[7], (1, ACTION_SIZE), bt)

    # packed (kernel) layouts -- built once, host-side
    p["emb_pad"] = jnp.concatenate(
        [p["embedding"],
         jnp.zeros((VOCAB_PAD - VOCAB_SIZE, EMBEDDING_DIM), jnp.float32)], 0)
    p["dct_packed"] = pack_lstm_group([p["dct_lstm"]], EMBEDDING_DIM, _H)
    p["dct_wf"], p["dct_wb"] = split_head_weight(p["dct_w"], 1, _H)
    p["time_packed"] = pack_lstm_group([p["left_lstm"], p["right_lstm"]],
                                       EMBEDDING_DIM, _H)
    p["time_wf"], p["time_wb"] = split_head_weight(p["time_w"], 2, _H)
    return p


# ---- forward (one fused pallas_call per branch) ------------------------------
def _ids_time_major(tokens_bt):
    # (B, T) int32 -> (T*B,) int32 with element t*B + b = tokens[b, t]
    return jnp.transpose(tokens_bt).reshape(-1).astype(jnp.int32)


@jax.jit
def dct_forward(params, tokens):
    ids = _ids_time_major(tokens)                                 # (T*B,)
    return fused_bilstm_head(ids, params["emb_pad"], params["dct_packed"],
                             params["dct_wf"], params["dct_wb"],
                             params["dct_b"],
                             T=SEQ_LEN, B=BATCH_SIZE, G=1)


@jax.jit
def time_forward(params, tokens):
    # tokens: (B, 2, T). Only the int32 ids leave XLA-land; both LSTMs, the
    # embedding gathers, the concat and the head run inside one kernel.
    ids = jnp.concatenate([_ids_time_major(tokens[:, 0, :]),
                           _ids_time_major(tokens[:, 1, :])])     # (2*T*B,)
    out = fused_bilstm_head(ids, params["emb_pad"], params["time_packed"],
                            params["time_wf"], params["time_wb"],
                            params["time_b"],
                            T=SEQ_LEN, B=BATCH_SIZE, G=2)
    return out.reshape(BATCH_SIZE, 1, -1)


def dqn_inferrer_forward(params, state_i, dpath_input):
    if state_i == 0:
        return dct_forward(params, dpath_input.reshape(BATCH_SIZE, -1))
    return time_forward(params, dpath_input)


# ---- pure-JAX reference (original unfused semantics, logical params) --------
def _ref_cell(gates, c_prev, H):
    i = jax.nn.sigmoid(gates[:, 0 * H:1 * H])
    f = jax.nn.sigmoid(gates[:, 1 * H:2 * H])
    g = jnp.tanh(gates[:, 2 * H:3 * H])
    o = jax.nn.sigmoid(gates[:, 3 * H:4 * H])
    c = f * c_prev + i * g
    return o * jnp.tanh(c), c


def _ref_bilstm_last(x_bte, p):
    B, T, _ = x_bte.shape
    H = p["whh_f"].shape[0]
    dot = functools.partial(jnp.dot, precision=lax.Precision.HIGHEST)
    h = jnp.zeros((B, H), jnp.float32)
    c = jnp.zeros((B, H), jnp.float32)
    for t in range(T):
        gates = dot(x_bte[:, t, :], p["wih_f"]) + dot(h, p["whh_f"]) + p["b_f"]
        h, c = _ref_cell(gates, c, H)
    gates_b = (dot(x_bte[:, -1, :], p["wih_b"])
               + dot(jnp.zeros((B, H)), p["whh_b"]) + p["b_b"])
    h_b, _ = _ref_cell(gates_b, jnp.zeros((B, H), jnp.float32), H)
    return jnp.concatenate([h, h_b], axis=1)


def _ref_logsoftmax(x):
    m = jnp.max(x, axis=1, keepdims=True)
    z = x - m
    return z - jnp.log(jnp.sum(jnp.exp(z), axis=1, keepdims=True))


def ref_dct(params, tokens):
    x = params["embedding"][tokens]
    feat = _ref_bilstm_last(x, params["dct_lstm"])
    logits = jnp.dot(feat, params["dct_w"],
                     precision=lax.Precision.HIGHEST) + params["dct_b"]
    return _ref_logsoftmax(logits)


def ref_time(params, tokens):
    lf = _ref_bilstm_last(params["embedding"][tokens[:, 0, :]],
                          params["left_lstm"])
    rf = _ref_bilstm_last(params["embedding"][tokens[:, 1, :]],
                          params["right_lstm"])
    feat = jnp.concatenate([lf, rf], axis=1)
    logits = jnp.dot(feat, params["time_w"],
                     precision=lax.Precision.HIGHEST) + params["time_b"]
    return _ref_logsoftmax(logits).reshape(BATCH_SIZE, 1, -1)


# ---- main --------------------------------------------------------------------
if __name__ == "__main__":
    root = jax.random.PRNGKey(0)
    k_params, k_dct, k_time = jax.random.split(root, 3)
    params = make_params(k_params)

    dct_tokens = jax.random.randint(k_dct, (BATCH_SIZE, SEQ_LEN), 0,
                                    VOCAB_SIZE, dtype=jnp.int32)
    time_tokens = jax.random.randint(k_time, (BATCH_SIZE, 2, SEQ_LEN), 0,
                                     VOCAB_SIZE, dtype=jnp.int32)

    dct_score = dqn_inferrer_forward(params, 0, dct_tokens)
    time_score = dqn_inferrer_forward(params, 1, time_tokens)
    jax.block_until_ready(dct_score)
    jax.block_until_ready(time_score)

    assert dct_score.shape == (BATCH_SIZE, ACTION_SIZE)
    assert time_score.shape == (BATCH_SIZE, 1, ACTION_SIZE)

    # log_softmax rows must sum to ~1 in prob space
    assert bool(jnp.allclose(jnp.sum(jnp.exp(dct_score), axis=1), 1.0,
                             atol=1e-4))
    assert bool(jnp.allclose(jnp.sum(jnp.exp(time_score[:, 0, :]), axis=1),
                             1.0, atol=1e-4))

    # fused + packed + prescaled bf16 kernels must match the pure-JAX reference
    dct_ref = ref_dct(params, dct_tokens)
    time_ref = ref_time(params, time_tokens)
    assert bool(jnp.allclose(dct_score, dct_ref, atol=5e-2, rtol=5e-2))
    assert bool(jnp.allclose(time_score, time_ref, atol=5e-2, rtol=5e-2))

    print("KERNEL_OK")
</pallas_src>

<mosaic_0001>
module attributes {stable_mosaic.version = 11 : i64} {
  func.func @kernel(%arg0: i32, %arg1: memref<16xi32, #tpu.memory_space<smem>>, %arg2: memref<128x32xf32, #tpu.memory_space<vmem>>, %arg3: memref<32x128xbf16, #tpu.memory_space<vmem>>, %arg4: memref<16x64xbf16, #tpu.memory_space<vmem>>, %arg5: memref<1x128xf32, #tpu.memory_space<vmem>>, %arg6: memref<16x8xbf16, #tpu.memory_space<vmem>>, %arg7: memref<16x8xbf16, #tpu.memory_space<vmem>>, %arg8: memref<1x8xf32, #tpu.memory_space<vmem>>, %arg9: memref<2x8xf32, #tpu.memory_space<vmem>>, %arg10: memref<64x128xf32, #tpu.memory_space<vmem>>) attributes {dimension_semantics = [#tpu.dimension_semantics<arbitrary>], iteration_bounds = array<i64: 1>, scalar_prefetch = 1 : i64, scratch_operands = 1 : i64, tpu.core_type = #tpu.core_type<tc>, window_params = [{pipeline_mode = #tpu.pipeline_mode<synchronous>, transform_indices = @transform_0, window_bounds = array<i64: 128, 32>}, {pipeline_mode = #tpu.pipeline_mode<synchronous>, transform_indices = @transform_1, window_bounds = array<i64: 32, 128>}, {pipeline_mode = #tpu.pipeline_mode<synchronous>, transform_indices = @transform_2, window_bounds = array<i64: 16, 64>}, {pipeline_mode = #tpu.pipeline_mode<synchronous>, transform_indices = @transform_3, window_bounds = array<i64: 1, 128>}, {pipeline_mode = #tpu.pipeline_mode<synchronous>, transform_indices = @transform_4, window_bounds = array<i64: 16, 8>}, {pipeline_mode = #tpu.pipeline_mode<synchronous>, transform_indices = @transform_5, window_bounds = array<i64: 16, 8>}, {pipeline_mode = #tpu.pipeline_mode<synchronous>, transform_indices = @transform_6, window_bounds = array<i64: 1, 8>}, {pipeline_mode = #tpu.pipeline_mode<synchronous>, transform_indices = @transform_7, window_bounds = array<i64: 2, 8>}]} {
    %0 = tpu.iota {dimensions = array<i32: 1>} : vector<1x128xi32>
    %c0 = arith.constant 0 : index
    %c0_0 = arith.constant 0 : index
    %1 = vector.load %arg3[%c0, %c0_0] : memref<32x128xbf16, #tpu.memory_space<vmem>>, vector<32x128xbf16>
    %c0_1 = arith.constant 0 : index
    %c0_2 = arith.constant 0 : index
    %2 = vector.load %arg4[%c0_1, %c0_2] : memref<16x64xbf16, #tpu.memory_space<vmem>>, vector<16x64xbf16>
    %cst = arith.constant 0.000000e+00 : f32
    %3 = vector.broadcast %cst : f32 to vector<64x128xf32>
    %c0_3 = arith.constant 0 : index
    %c0_4 = arith.constant 0 : index
    %4 = vector.load %arg10[%c0_3, %c0_4] : memref<64x128xf32, #tpu.memory_space<vmem>>, vector<64x128xf32>
    tpu.vector_store %arg10[%c0_3, %c0_4], %3 {strides = array<i32>} : memref<64x128xf32, #tpu.memory_space<vmem>>, vector<64x128xf32>,
    %c0_5 = arith.constant 0 : index
    %5 = memref.load %arg1[%c0_5] : memref<16xi32, #tpu.memory_space<smem>>
    %6 = vector.broadcast %5 : i32 to vector<1x128xi32>
    %7 = arith.cmpi eq, %0, %6 : vector<1x128xi32>
    %8 = arith.extui %7 : vector<1x128xi1> to vector<1x128xi32>
    %9 = arith.sitofp %8 : vector<1x128xi32> to vector<1x128xf32>
    %c0_6 = arith.constant 0 : index
    %c0_7 = arith.constant 0 : index
    %10 = vector.load %arg10[%c0_6, %c0_7] : memref<64x128xf32, #tpu.memory_space<vmem>>, vector<1x128xf32>
    tpu.vector_store %arg10[%c0_6, %c0_7], %9 {strides = array<i32>} : memref<64x128xf32, #tpu.memory_space<vmem>>, vector<1x128xf32>,
    %c1 = arith.constant 1 : index
    %11 = memref.load %arg1[%c1] : memref<16xi32, #tpu.memory_space<smem>>
    %12 = vector.broadcast %11 : i32 to vector<1x128xi32>
    %13 = arith.cmpi eq, %0, %12 : vector<1x128xi32>
    %14 = arith.extui %13 : vector<1x128xi1> to vector<1x128xi32>
    %15 = arith.sitofp %14 : vector<1x128xi32> to vector<1x128xf32>
    %c1_8 = arith.constant 1 : index
    %c0_9 = arith.constant 0 : index
    %16 = vector.load %arg10[%c1_8, %c0_9] : memref<64x128xf32, #tpu.memory_space<vmem>>, vector<1x128xf32>
    tpu.vector_store %arg10[%c1_8, %c0_9], %15 {strides = array<i32>} : memref<64x128xf32, #tpu.memory_space<vmem>>, vector<1x128xf32>,
    %c2 = arith.constant 2 : index
    %17 = memref.load %arg1[%c2] : memref<16xi32, #tpu.memory_space<smem>>
    %18 = vector.broadcast %17 : i32 to vector<1x128xi32>
    %19 = arith.cmpi eq, %0, %18 : vector<1x128xi32>
    %20 = arith.extui %19 : vector<1x128xi1> to vector<1x128xi32>
    %21 = arith.sitofp %20 : vector<1x128xi32> to vector<1x128xf32>
    %c8 = arith.constant 8 : index
    %c0_10 = arith.constant 0 : index
    %22 = vector.load %arg10[%c8, %c0_10] : memref<64x128xf32, #tpu.memory_space<vmem>>, vector<1x128xf32>
    tpu.vector_store %arg10[%c8, %c0_10], %21 {strides = array<i32>} : memref<64x128xf32, #tpu.memory_space<vmem>>, vector<1x128xf32>,
    %c3 = arith.constant 3 : index
    %23 = memref.load %arg1[%c3] : memref<16xi32, #tpu.memory_space<smem>>
    %24 = vector.broadcast %23 : i32 to vector<1x128xi32>
    %25 = arith.cmpi eq, %0, %24 : vector<1x128xi32>
    %26 = arith.extui %25 : vector<1x128xi1> to vector<1x128xi32>
    %27 = arith.sitofp %26 : vector<1x128xi32> to vector<1x128xf32>
    %c9 = arith.constant 9 : index
    %c0_11 = arith.constant 0 : index
    %28 = vector.load %arg10[%c9, %c0_11] : memref<64x128xf32, #tpu.memory_space<vmem>>, vector<1x128xf32>
    tpu.vector_store %arg10[%c9, %c0_11], %27 {strides = array<i32>} : memref<64x128xf32, #tpu.memory_space<vmem>>, vector<1x128xf32>,
    %c4 = arith.constant 4 : index
    %29 = memref.load %arg1[%c4] : memref<16xi32, #tpu.memory_space<smem>>
    %30 = vector.broadcast %29 : i32 to vector<1x128xi32>
    %31 = arith.cmpi eq, %0, %30 : vector<1x128xi32>
    %32 = arith.extui %31 : vector<1x128xi1> to vector<1x128xi32>
    %33 = arith.sitofp %32 : vector<1x128xi32> to vector<1x128xf32>
    %c16 = arith.constant 16 : index
    %c0_12 = arith.constant 0 : index
    %34 = vector.load %arg10[%c16, %c0_12] : memref<64x128xf32, #tpu.memory_space<vmem>>, vector<1x128xf32>
    tpu.vector_store %arg10[%c16, %c0_12], %33 {strides = array<i32>} : memref<64x128xf32, #tpu.memory_space<vmem>>, vector<1x128xf32>,
    %c5 = arith.constant 5 : index
    %35 = memref.load %arg1[%c5] : memref<16xi32, #tpu.memory_space<smem>>
    %36 = vector.broadcast %35 : i32 to vector<1x128xi32>
    %37 = arith.cmpi eq, %0, %36 : vector<1x128xi32>
    %38 = arith.extui %37 : vector<1x128xi1> to vector<1x128xi32>
    %39 = arith.sitofp %38 : vector<1x128xi32> to vector<1x128xf32>
    %c17 = arith.constant 17 : index
    %c0_13 = arith.constant 0 : index
    %40 = vector.load %arg10[%c17, %c0_13] : memref<64x128xf32, #tpu.memory_space<vmem>>, vector<1x128xf32>
    tpu.vector_store %arg10[%c17, %c0_13], %39 {strides = array<i32>} : memref<64x128xf32, #tpu.memory_space<vmem>>, vector<1x128xf32>,
    %c6 = arith.constant 6 : index
    %41 = memref.load %arg1[%c6] : memref<16xi32, #tpu.memory_space<smem>>
    %42 = vector.broadcast %41 : i32 to vector<1x128xi32>
    %43 = arith.cmpi eq, %0, %42 : vector<1x128xi32>
    %44 = arith.extui %43 : vector<1x128xi1> to vector<1x128xi32>
    %45 = arith.sitofp %44 : vector<1x128xi32> to vector<1x128xf32>
    %c24 = arith.constant 24 : index
    %c0_14 = arith.constant 0 : index
    %46 = vector.load %arg10[%c24, %c0_14] : memref<64x128xf32, #tpu.memory_space<vmem>>, vector<1x128xf32>
    tpu.vector_store %arg10[%c24, %c0_14], %45 {strides = array<i32>} : memref<64x128xf32, #tpu.memory_space<vmem>>, vector<1x128xf32>,
    %c7 = arith.constant 7 : index
    %47 = memref.load %arg1[%c7] : memref<16xi32, #tpu.memory_space<smem>>
    %48 = vector.broadcast %47 : i32 to vector<1x128xi32>
    %49 = arith.cmpi eq, %0, %48 : vector<1x128xi32>
    %50 = arith.extui %49 : vector<1x128xi1> to vector<1x128xi32>
    %51 = arith.sitofp %50 : vector<1x128xi32> to vector<1x128xf32>
    %c25 = arith.constant 25 : index
    %c0_15 = arith.constant 0 : index
    %52 = vector.load %arg10[%c25, %c0_15] : memref<64x128xf32, #tpu.memory_space<vmem>>, vector<1x128xf32>
    tpu.vector_store %arg10[%c25, %c0_15], %51 {strides = array<i32>} : memref<64x128xf32, #tpu.memory_space<vmem>>, vector<1x128xf32>,
    %c8_16 = arith.constant 8 : index
    %53 = memref.load %arg1[%c8_16] : memref<16xi32, #tpu.memory_space<smem>>
    %54 = vector.broadcast %53 : i32 to vector<1x128xi32>
    %55 = arith.cmpi eq, %0, %54 : vector<1x128xi32>
    %56 = arith.extui %55 : vector<1x128xi1> to vector<1x128xi32>
    %57 = arith.sitofp %56 : vector<1x128xi32> to vector<1x128xf32>
    %c32 = arith.constant 32 : index
    %c0_17 = arith.constant 0 : index
    %58 = vector.load %arg10[%c32, %c0_17] : memref<64x128xf32, #tpu.memory_space<vmem>>, vector<1x128xf32>
    tpu.vector_store %arg10[%c32, %c0_17], %57 {strides = array<i32>} : memref<64x128xf32, #tpu.memory_space<vmem>>, vector<1x128xf32>,
    %c9_18 = arith.constant 9 : index
    %59 = memref.load %arg1[%c9_18] : memref<16xi32, #tpu.memory_space<smem>>
    %60 = vector.broadcast %59 : i32 to vector<1x128xi32>
    %61 = arith.cmpi eq, %0, %60 : vector<1x128xi32>
    %62 = arith.extui %61 : vector<1x128xi1> to vector<1x128xi32>
    %63 = arith.sitofp %62 : vector<1x128xi32> to vector<1x128xf32>
    %c33 = arith.constant 33 : index
    %c0_19 = arith.constant 0 : index
    %64 = vector.load %arg10[%c33, %c0_19] : memref<64x128xf32, #tpu.memory_space<vmem>>, vector<1x128xf32>
    tpu.vector_store %arg10[%c33, %c0_19], %63 {strides = array<i32>} : memref<64x128xf32, #tpu.memory_space<vmem>>, vector<1x128xf32>,
    %c10 = arith.constant 10 : index
    %65 = memref.load %arg1[%c10] : memref<16xi32, #tpu.memory_space<smem>>
    %66 = vector.broadcast %65 : i32 to vector<1x128xi32>
    %67 = arith.cmpi eq, %0, %66 : vector<1x128xi32>
    %68 = arith.extui %67 : vector<1x128xi1> to vector<1x128xi32>
    %69 = arith.sitofp %68 : vector<1x128xi32> to vector<1x128xf32>
    %c40 = arith.constant 40 : index
    %c0_20 = arith.constant 0 : index
    %70 = vector.load %arg10[%c40, %c0_20] : memref<64x128xf32, #tpu.memory_space<vmem>>, vector<1x128xf32>
    tpu.vector_store %arg10[%c40, %c0_20], %69 {strides = array<i32>} : memref<64x128xf32, #tpu.memory_space<vmem>>, vector<1x128xf32>,
    %c11 = arith.constant 11 : index
    %71 = memref.load %arg1[%c11] : memref<16xi32, #tpu.memory_space<smem>>
    %72 = vector.broadcast %71 : i32 to vector<1x128xi32>
    %73 = arith.cmpi eq, %0, %72 : vector<1x128xi32>
    %74 = arith.extui %73 : vector<1x128xi1> to vector<1x128xi32>
    %75 = arith.sitofp %74 : vector<1x128xi32> to vector<1x128xf32>
    %c41 = arith.constant 41 : index
    %c0_21 = arith.constant 0 : index
    %76 = vector.load %arg10[%c41, %c0_21] : memref<64x128xf32, #tpu.memory_space<vmem>>, vector<1x128xf32>
    tpu.vector_store %arg10[%c41, %c0_21], %75 {strides = array<i32>} : memref<64x128xf32, #tpu.memory_space<vmem>>, vector<1x128xf32>,
    %c12 = arith.constant 12 : index
    %77 = memref.load %arg1[%c12] : memref<16xi32, #tpu.memory_space<smem>>
    %78 = vector.broadcast %77 : i32 to vector<1x128xi32>
    %79 = arith.cmpi eq, %0, %78 : vector<1x128xi32>
    %80 = arith.extui %79 : vector<1x128xi1> to vector<1x128xi32>
    %81 = arith.sitofp %80 : vector<1x128xi32> to vector<1x128xf32>
    %c48 = arith.constant 48 : index
    %c0_22 = arith.constant 0 : index
    %82 = vector.load %arg10[%c48, %c0_22] : memref<64x128xf32, #tpu.memory_space<vmem>>, vector<1x128xf32>
    tpu.vector_store %arg10[%c48, %c0_22], %81 {strides = array<i32>} : memref<64x128xf32, #tpu.memory_space<vmem>>, vector<1x128xf32>,
    %c13 = arith.constant 13 : index
    %83 = memref.load %arg1[%c13] : memref<16xi32, #tpu.memory_space<smem>>
    %84 = vector.broadcast %83 : i32 to vector<1x128xi32>
    %85 = arith.cmpi eq, %0, %84 : vector<1x128xi32>
    %86 = arith.extui %85 : vector<1x128xi1> to vector<1x128xi32>
    %87 = arith.sitofp %86 : vector<1x128xi32> to vector<1x128xf32>
    %c49 = arith.constant 49 : index
    %c0_23 = arith.constant 0 : index
    %88 = vector.load %arg10[%c49, %c0_23] : memref<64x128xf32, #tpu.memory_space<vmem>>, vector<1x128xf32>
    tpu.vector_store %arg10[%c49, %c0_23], %87 {strides = array<i32>} : memref<64x128xf32, #tpu.memory_space<vmem>>, vector<1x128xf32>,
    %c14 = arith.constant 14 : index
    %89 = memref.load %arg1[%c14] : memref<16xi32, #tpu.memory_space<smem>>
    %90 = vector.broadcast %89 : i32 to vector<1x128xi32>
    %91 = arith.cmpi eq, %0, %90 : vector<1x128xi32>
    %92 = arith.extui %91 : vector<1x128xi1> to vector<1x128xi32>
    %93 = arith.sitofp %92 : vector<1x128xi32> to vector<1x128xf32>
    %c56 = arith.constant 56 : index
    %c0_24 = arith.constant 0 : index
    %94 = vector.load %arg10[%c56, %c0_24] : memref<64x128xf32, #tpu.memory_space<vmem>>, vector<1x128xf32>
    tpu.vector_store %arg10[%c56, %c0_24], %93 {strides = array<i32>} : memref<64x128xf32, #tpu.memory_space<vmem>>, vector<1x128xf32>,
    %c15 = arith.constant 15 : index
    %95 = memref.load %arg1[%c15] : memref<16xi32, #tpu.memory_space<smem>>
    %96 = vector.broadcast %95 : i32 to vector<1x128xi32>
    %97 = arith.cmpi eq, %0, %96 : vector<1x128xi32>
    %98 = arith.extui %97 : vector<1x128xi1> to vector<1x128xi32>
    %99 = arith.sitofp %98 : vector<1x128xi32> to vector<1x128xf32>
    %c57 = arith.constant 57 : index
    %c0_25 = arith.constant 0 : index
    %100 = vector.load %arg10[%c57, %c0_25] : memref<64x128xf32, #tpu.memory_space<vmem>>, vector<1x128xf32>
    tpu.vector_store %arg10[%c57, %c0_25], %99 {strides = array<i32>} : memref<64x128xf32, #tpu.memory_space<vmem>>, vector<1x128xf32>,
    %c0_26 = arith.constant 0 : index
    %c0_27 = arith.constant 0 : index
    %101 = vector.load %arg10[%c0_26, %c0_27] : memref<64x128xf32, #tpu.memory_space<vmem>>, vector<64x128xf32>
    %c0_28 = arith.constant 0 : index
    %c0_29 = arith.constant 0 : index
    %102 = vector.load %arg2[%c0_28, %c0_29] : memref<128x32xf32, #tpu.memory_space<vmem>>, vector<128x32xf32>
    %cst_30 = arith.constant dense<0.000000e+00> : vector<64x32xf32>
    %103 = tpu.matmul %101, %102, %cst_30 {dimension_numbers = #tpu.dot_dimension_numbers<[1], [0], [0], [1], [0, 0, 1, 1], [], []>} : vector<64x128xf32>, vector<128x32xf32>, vector<64x32xf32> -> vector<64x32xf32>
    %104 = arith.truncf %103 : vector<64x32xf32> to vector<64x32xbf16>
    %cst_31 = arith.constant dense<0.000000e+00> : vector<64x128xf32>
    %105 = tpu.matmul %104, %1, %cst_31 {dimension_numbers = #tpu.dot_dimension_numbers<[1], [0], [0], [1], [0, 0, 1, 1], [], []>} : vector<64x32xbf16>, vector<32x128xbf16>, vector<64x128xf32> -> vector<64x128xf32>
    %c0_32 = arith.constant 0 : index
    %c0_33 = arith.constant 0 : index
    %106 = vector.load %arg5[%c0_32, %c0_33] : memref<1x128xf32, #tpu.memory_space<vmem>>, vector<1x128xf32>
    %107 = vector.broadcast %106 : vector<1x128xf32> to vector<64x128xf32>
    %108 = arith.addf %105, %107 : vector<64x128xf32>
    %109 = vector.extract_strided_slice %108 {offsets = [0, 0], sizes = [64, 64], strides = [1, 1]} : vector<64x128xf32> to vector<64x64xf32>
    %cst_34 = arith.constant 0.000000e+00 : f32
    %110 = vector.broadcast %cst_34 : f32 to vector<8x16xf32>
    %cst_35 = arith.constant 0.000000e+00 : f32
    %111 = vector.broadcast %cst_35 : f32 to vector<8x16xf32>
    %112 = vector.extract_strided_slice %109 {offsets = [0, 0], sizes = [8, 64], strides = [1, 1]} : vector<64x64xf32> to vector<8x64xf32>
    %113 = arith.truncf %110 : vector<8x16xf32> to vector<8x16xbf16>
    %cst_36 = arith.constant dense<0.000000e+00> : vector<8x64xf32>
    %114 = tpu.matmul %113, %2, %cst_36 {dimension_numbers = #tpu.dot_dimension_numbers<[1], [0], [0], [1], [0, 0, 1, 1], [], []>} : vector<8x16xbf16>, vector<16x64xbf16>, vector<8x64xf32> -> vector<8x64xf32>
    %115 = arith.addf %112, %114 : vector<8x64xf32>
    %116 = math.tanh %115 : vector<8x64xf32>
    %117 = vector.extract_strided_slice %116 {offsets = [0, 0], sizes = [8, 16], strides = [1, 1]} : vector<8x64xf32> to vector<8x16xf32>
    %cst_37 = arith.constant 1.000000e+00 : f32
    %118 = vector.broadcast %cst_37 : f32 to vector<8x16xf32>
    %119 = arith.addf %117, %118 : vector<8x16xf32>
    %cst_38 = arith.constant 5.000000e-01 : f32
    %120 = vector.broadcast %cst_38 : f32 to vector<8x16xf32>
    %121 = arith.mulf %120, %119 : vector<8x16xf32>
    %122 = vector.extract_strided_slice %116 {offsets = [0, 16], sizes = [8, 16], strides = [1, 1]} : vector<8x64xf32> to vector<8x16xf32>
    %cst_39 = arith.constant 1.000000e+00 : f32
    %123 = vector.broadcast %cst_39 : f32 to vector<8x16xf32>
    %124 = arith.addf %122, %123 : vector<8x16xf32>
    %cst_40 = arith.constant 5.000000e-01 : f32
    %125 = vector.broadcast %cst_40 : f32 to vector<8x16xf32>
    %126 = arith.mulf %125, %124 : vector<8x16xf32>
    %127 = vector.extract_strided_slice %116 {offsets = [0, 32], sizes = [8, 16], strides = [1, 1]} : vector<8x64xf32> to vector<8x16xf32>
    %128 = vector.extract_strided_slice %116 {offsets = [0, 48], sizes = [8, 16], strides = [1, 1]} : vector<8x64xf32> to vector<8x16xf32>
    %cst_41 = arith.constant 1.000000e+00 : f32
    %129 = vector.broadcast %cst_41 : f32 to vector<8x16xf32>
    %130 = arith.addf %128, %129 : vector<8x16xf32>
    %cst_42 = arith.constant 5.000000e-01 : f32
    %131 = vector.broadcast %cst_42 : f32 to vector<8x16xf32>
    %132 = arith.mulf %131, %130 : vector<8x16xf32>
    %133 = arith.mulf %126, %111 : vector<8x16xf32>
    %134 = arith.mulf %121, %127 : vector<8x16xf32>
    %135 = arith.addf %133, %134 : vector<8x16xf32>
    %136 = math.tanh %135 : vector<8x16xf32>
    %137 = arith.mulf %132, %136 : vector<8x16xf32>
    %138 = vector.extract_strided_slice %109 {offsets = [8, 0], sizes = [8, 64], strides = [1, 1]} : vector<64x64xf32> to vector<8x64xf32>
    %139 = arith.truncf %137 : vector<8x16xf32> to vector<8x16xbf16>
    %cst_43 = arith.constant dense<0.000000e+00> : vector<8x64xf32>
    %140 = tpu.matmul %139, %2, %cst_43 {dimension_numbers = #tpu.dot_dimension_numbers<[1], [0], [0], [1], [0, 0, 1, 1], [], []>} : vector<8x16xbf16>, vector<16x64xbf16>, vector<8x64xf32> -> vector<8x64xf32>
    %141 = arith.addf %138, %140 : vector<8x64xf32>
    %142 = math.tanh %141 : vector<8x64xf32>
    %143 = vector.extract_strided_slice %142 {offsets = [0, 0], sizes = [8, 16], strides = [1, 1]} : vector<8x64xf32> to vector<8x16xf32>
    %cst_44 = arith.constant 1.000000e+00 : f32
    %144 = vector.broadcast %cst_44 : f32 to vector<8x16xf32>
    %145 = arith.addf %143, %144 : vector<8x16xf32>
    %cst_45 = arith.constant 5.000000e-01 : f32
    %146 = vector.broadcast %cst_45 : f32 to vector<8x16xf32>
    %147 = arith.mulf %146, %145 : vector<8x16xf32>
    %148 = vector.extract_strided_slice %142 {offsets = [0, 16], sizes = [8, 16], strides = [1, 1]} : vector<8x64xf32> to vector<8x16xf32>
    %cst_46 = arith.constant 1.000000e+00 : f32
    %149 = vector.broadcast %cst_46 : f32 to vector<8x16xf32>
    %150 = arith.addf %148, %149 : vector<8x16xf32>
    %cst_47 = arith.constant 5.000000e-01 : f32
    %151 = vector.broadcast %cst_47 : f32 to vector<8x16xf32>
    %152 = arith.mulf %151, %150 : vector<8x16xf32>
    %153 = vector.extract_strided_slice %142 {offsets = [0, 32], sizes = [8, 16], strides = [1, 1]} : vector<8x64xf32> to vector<8x16xf32>
    %154 = vector.extract_strided_slice %142 {offsets = [0, 48], sizes = [8, 16], strides = [1, 1]} : vector<8x64xf32> to vector<8x16xf32>
    %cst_48 = arith.constant 1.000000e+00 : f32
    %155 = vector.broadcast %cst_48 : f32 to vector<8x16xf32>
    %156 = arith.addf %154, %155 : vector<8x16xf32>
    %cst_49 = arith.constant 5.000000e-01 : f32
    %157 = vector.broadcast %cst_49 : f32 to vector<8x16xf32>
    %158 = arith.mulf %157, %156 : vector<8x16xf32>
    %159 = arith.mulf %152, %135 : vector<8x16xf32>
    %160 = arith.mulf %147, %153 : vector<8x16xf32>
    %161 = arith.addf %159, %160 : vector<8x16xf32>
    %162 = math.tanh %161 : vector<8x16xf32>
    %163 = arith.mulf %158, %162 : vector<8x16xf32>
    %164 = vector.extract_strided_slice %109 {offsets = [16, 0], sizes = [8, 64], strides = [1, 1]} : vector<64x64xf32> to vector<8x64xf32>
    %165 = arith.truncf %163 : vector<8x16xf32> to vector<8x16xbf16>
    %cst_50 = arith.constant dense<0.000000e+00> : vector<8x64xf32>
    %166 = tpu.matmul %165, %2, %cst_50 {dimension_numbers = #tpu.dot_dimension_numbers<[1], [0], [0], [1], [0, 0, 1, 1], [], []>} : vector<8x16xbf16>, vector<16x64xbf16>, vector<8x64xf32> -> vector<8x64xf32>
    %167 = arith.addf %164, %166 : vector<8x64xf32>
    %168 = math.tanh %167 : vector<8x64xf32>
    %169 = vector.extract_strided_slice %168 {offsets = [0, 0], sizes = [8, 16], strides = [1, 1]} : vector<8x64xf32> to vector<8x16xf32>
    %cst_51 = arith.constant 1.000000e+00 : f32
    %170 = vector.broadcast %cst_51 : f32 to vector<8x16xf32>
    %171 = arith.addf %169, %170 : vector<8x16xf32>
    %cst_52 = arith.constant 5.000000e-01 : f32
    %172 = vector.broadcast %cst_52 : f32 to vector<8x16xf32>
    %173 = arith.mulf %172, %171 : vector<8x16xf32>
    %174 = vector.extract_strided_slice %168 {offsets = [0, 16], sizes = [8, 16], strides = [1, 1]} : vector<8x64xf32> to vector<8x16xf32>
    %cst_53 = arith.constant 1.000000e+00 : f32
    %175 = vector.broadcast %cst_53 : f32 to vector<8x16xf32>
    %176 = arith.addf %174, %175 : vector<8x16xf32>
    %cst_54 = arith.constant 5.000000e-01 : f32
    %177 = vector.broadcast %cst_54 : f32 to vector<8x16xf32>
    %178 = arith.mulf %177, %176 : vector<8x16xf32>
    %179 = vector.extract_strided_slice %168 {offsets = [0, 32], sizes = [8, 16], strides = [1, 1]} : vector<8x64xf32> to vector<8x16xf32>
    %180 = vector.extract_strided_slice %168 {offsets = [0, 48], sizes = [8, 16], strides = [1, 1]} : vector<8x64xf32> to vector<8x16xf32>
    %cst_55 = arith.constant 1.000000e+00 : f32
    %181 = vector.broadcast %cst_55 : f32 to vector<8x16xf32>
    %182 = arith.addf %180, %181 : vector<8x16xf32>
    %cst_56 = arith.constant 5.000000e-01 : f32
    %183 = vector.broadcast %cst_56 : f32 to vector<8x16xf32>
    %184 = arith.mulf %183, %182 : vector<8x16xf32>
    %185 = arith.mulf %178, %161 : vector<8x16xf32>
    %186 = arith.mulf %173, %179 : vector<8x16xf32>
    %187 = arith.addf %185, %186 : vector<8x16xf32>
    %188 = math.tanh %187 : vector<8x16xf32>
    %189 = arith.mulf %184, %188 : vector<8x16xf32>
    %190 = vector.extract_strided_slice %109 {offsets = [24, 0], sizes = [8, 64], strides = [1, 1]} : vector<64x64xf32> to vector<8x64xf32>
    %191 = arith.truncf %189 : vector<8x16xf32> to vector<8x16xbf16>
    %cst_57 = arith.constant dense<0.000000e+00> : vector<8x64xf32>
    %192 = tpu.matmul %191, %2, %cst_57 {dimension_numbers = #tpu.dot_dimension_numbers<[1], [0], [0], [1], [0, 0, 1, 1], [], []>} : vector<8x16xbf16>, vector<16x64xbf16>, vector<8x64xf32> -> vector<8x64xf32>
    %193 = arith.addf %190, %192 : vector<8x64xf32>
    %194 = math.tanh %193 : vector<8x64xf32>
    %195 = vector.extract_strided_slice %194 {offsets = [0, 0], sizes = [8, 16], strides = [1, 1]} : vector<8x64xf32> to vector<8x16xf32>
    %cst_58 = arith.constant 1.000000e+00 : f32
    %196 = vector.broadcast %cst_58 : f32 to vector<8x16xf32>
    %197 = arith.addf %195, %196 : vector<8x16xf32>
    %cst_59 = arith.constant 5.000000e-01 : f32
    %198 = vector.broadcast %cst_59 : f32 to vector<8x16xf32>
    %199 = arith.mulf %198, %197 : vector<8x16xf32>
    %200 = vector.extract_strided_slice %194 {offsets = [0, 16], sizes = [8, 16], strides = [1, 1]} : vector<8x64xf32> to vector<8x16xf32>
    %cst_60 = arith.constant 1.000000e+00 : f32
    %201 = vector.broadcast %cst_60 : f32 to vector<8x16xf32>
    %202 = arith.addf %200, %201 : vector<8x16xf32>
    %cst_61 = arith.constant 5.000000e-01 : f32
    %203 = vector.broadcast %cst_61 : f32 to vector<8x16xf32>
    %204 = arith.mulf %203, %202 : vector<8x16xf32>
    %205 = vector.extract_strided_slice %194 {offsets = [0, 32], sizes = [8, 16], strides = [1, 1]} : vector<8x64xf32> to vector<8x16xf32>
    %206 = vector.extract_strided_slice %194 {offsets = [0, 48], sizes = [8, 16], strides = [1, 1]} : vector<8x64xf32> to vector<8x16xf32>
    %cst_62 = arith.constant 1.000000e+00 : f32
    %207 = vector.broadcast %cst_62 : f32 to vector<8x16xf32>
    %208 = arith.addf %206, %207 : vector<8x16xf32>
    %cst_63 = arith.constant 5.000000e-01 : f32
    %209 = vector.broadcast %cst_63 : f32 to vector<8x16xf32>
    %210 = arith.mulf %209, %208 : vector<8x16xf32>
    %211 = arith.mulf %204, %187 : vector<8x16xf32>
    %212 = arith.mulf %199, %205 : vector<8x16xf32>
    %213 = arith.addf %211, %212 : vector<8x16xf32>
    %214 = math.tanh %213 : vector<8x16xf32>
    %215 = arith.mulf %210, %214 : vector<8x16xf32>
    %216 = vector.extract_strided_slice %109 {offsets = [32, 0], sizes = [8, 64], strides = [1, 1]} : vector<64x64xf32> to vector<8x64xf32>
    %217 = arith.truncf %215 : vector<8x16xf32> to vector<8x16xbf16>
    %cst_64 = arith.constant dense<0.000000e+00> : vector<8x64xf32>
    %218 = tpu.matmul %217, %2, %cst_64 {dimension_numbers = #tpu.dot_dimension_numbers<[1], [0], [0], [1], [0, 0, 1, 1], [], []>} : vector<8x16xbf16>, vector<16x64xbf16>, vector<8x64xf32> -> vector<8x64xf32>
    %219 = arith.addf %216, %218 : vector<8x64xf32>
    %220 = math.tanh %219 : vector<8x64xf32>
    %221 = vector.extract_strided_slice %220 {offsets = [0, 0], sizes = [8, 16], strides = [1, 1]} : vector<8x64xf32> to vector<8x16xf32>
    %cst_65 = arith.constant 1.000000e+00 : f32
    %222 = vector.broadcast %cst_65 : f32 to vector<8x16xf32>
    %223 = arith.addf %221, %222 : vector<8x16xf32>
    %cst_66 = arith.constant 5.000000e-01 : f32
    %224 = vector.broadcast %cst_66 : f32 to vector<8x16xf32>
    %225 = arith.mulf %224, %223 : vector<8x16xf32>
    %226 = vector.extract_strided_slice %220 {offsets = [0, 16], sizes = [8, 16], strides = [1, 1]} : vector<8x64xf32> to vector<8x16xf32>
    %cst_67 = arith.constant 1.000000e+00 : f32
    %227 = vector.broadcast %cst_67 : f32 to vector<8x16xf32>
    %228 = arith.addf %226, %227 : vector<8x16xf32>
    %cst_68 = arith.constant 5.000000e-01 : f32
    %229 = vector.broadcast %cst_68 : f32 to vector<8x16xf32>
    %230 = arith.mulf %229, %228 : vector<8x16xf32>
    %231 = vector.extract_strided_slice %220 {offsets = [0, 32], sizes = [8, 16], strides = [1, 1]} : vector<8x64xf32> to vector<8x16xf32>
    %232 = vector.extract_strided_slice %220 {offsets = [0, 48], sizes = [8, 16], strides = [1, 1]} : vector<8x64xf32> to vector<8x16xf32>
    %cst_69 = arith.constant 1.000000e+00 : f32
    %233 = vector.broadcast %cst_69 : f32 to vector<8x16xf32>
    %234 = arith.addf %232, %233 : vector<8x16xf32>
    %cst_70 = arith.constant 5.000000e-01 : f32
    %235 = vector.broadcast %cst_70 : f32 to vector<8x16xf32>
    %236 = arith.mulf %235, %234 : vector<8x16xf32>
    %237 = arith.mulf %230, %213 : vector<8x16xf32>
    %238 = arith.mulf %225, %231 : vector<8x16xf32>
    %239 = arith.addf %237, %238 : vector<8x16xf32>
    %240 = math.tanh %239 : vector<8x16xf32>
    %241 = arith.mulf %236, %240 : vector<8x16xf32>
    %242 = vector.extract_strided_slice %109 {offsets = [40, 0], sizes = [8, 64], strides = [1, 1]} : vector<64x64xf32> to vector<8x64xf32>
    %243 = arith.truncf %241 : vector<8x16xf32> to vector<8x16xbf16>
    %cst_71 = arith.constant dense<0.000000e+00> : vector<8x64xf32>
    %244 = tpu.matmul %243, %2, %cst_71 {dimension_numbers = #tpu.dot_dimension_numbers<[1], [0], [0], [1], [0, 0, 1, 1], [], []>} : vector<8x16xbf16>, vector<16x64xbf16>, vector<8x64xf32> -> vector<8x64xf32>
    %245 = arith.addf %242, %244 : vector<8x64xf32>
    %246 = math.tanh %245 : vector<8x64xf32>
    %247 = vector.extract_strided_slice %246 {offsets = [0, 0], sizes = [8, 16], strides = [1, 1]} : vector<8x64xf32> to vector<8x16xf32>
    %cst_72 = arith.constant 1.000000e+00 : f32
    %248 = vector.broadcast %cst_72 : f32 to vector<8x16xf32>
    %249 = arith.addf %247, %248 : vector<8x16xf32>
    %cst_73 = arith.constant 5.000000e-01 : f32
    %250 = vector.broadcast %cst_73 : f32 to vector<8x16xf32>
    %251 = arith.mulf %250, %249 : vector<8x16xf32>
    %252 = vector.extract_strided_slice %246 {offsets = [0, 16], sizes = [8, 16], strides = [1, 1]} : vector<8x64xf32> to vector<8x16xf32>
    %cst_74 = arith.constant 1.000000e+00 : f32
    %253 = vector.broadcast %cst_74 : f32 to vector<8x16xf32>
    %254 = arith.addf %252, %253 : vector<8x16xf32>
    %cst_75 = arith.constant 5.000000e-01 : f32
    %255 = vector.broadcast %cst_75 : f32 to vector<8x16xf32>
    %256 = arith.mulf %255, %254 : vector<8x16xf32>
    %257 = vector.extract_strided_slice %246 {offsets = [0, 32], sizes = [8, 16], strides = [1, 1]} : vector<8x64xf32> to vector<8x16xf32>
    %258 = vector.extract_strided_slice %246 {offsets = [0, 48], sizes = [8, 16], strides = [1, 1]} : vector<8x64xf32> to vector<8x16xf32>
    %cst_76 = arith.constant 1.000000e+00 : f32
    %259 = vector.broadcast %cst_76 : f32 to vector<8x16xf32>
    %260 = arith.addf %258, %259 : vector<8x16xf32>
    %cst_77 = arith.constant 5.000000e-01 : f32
    %261 = vector.broadcast %cst_77 : f32 to vector<8x16xf32>
    %262 = arith.mulf %261, %260 : vector<8x16xf32>
    %263 = arith.mulf %256, %239 : vector<8x16xf32>
    %264 = arith.mulf %251, %257 : vector<8x16xf32>
    %265 = arith.addf %263, %264 : vector<8x16xf32>
    %266 = math.tanh %265 : vector<8x16xf32>
    %267 = arith.mulf %262, %266 : vector<8x16xf32>
    %268 = vector.extract_strided_slice %109 {offsets = [48, 0], sizes = [8, 64], strides = [1, 1]} : vector<64x64xf32> to vector<8x64xf32>
    %269 = arith.truncf %267 : vector<8x16xf32> to vector<8x16xbf16>
    %cst_78 = arith.constant dense<0.000000e+00> : vector<8x64xf32>
    %270 = tpu.matmul %269, %2, %cst_78 {dimension_numbers = #tpu.dot_dimension_numbers<[1], [0], [0], [1], [0, 0, 1, 1], [], []>} : vector<8x16xbf16>, vector<16x64xbf16>, vector<8x64xf32> -> vector<8x64xf32>
    %271 = arith.addf %268, %270 : vector<8x64xf32>
    %272 = math.tanh %271 : vector<8x64xf32>
    %273 = vector.extract_strided_slice %272 {offsets = [0, 0], sizes = [8, 16], strides = [1, 1]} : vector<8x64xf32> to vector<8x16xf32>
    %cst_79 = arith.constant 1.000000e+00 : f32
    %274 = vector.broadcast %cst_79 : f32 to vector<8x16xf32>
    %275 = arith.addf %273, %274 : vector<8x16xf32>
    %cst_80 = arith.constant 5.000000e-01 : f32
    %276 = vector.broadcast %cst_80 : f32 to vector<8x16xf32>
    %277 = arith.mulf %276, %275 : vector<8x16xf32>
    %278 = vector.extract_strided_slice %272 {offsets = [0, 16], sizes = [8, 16], strides = [1, 1]} : vector<8x64xf32> to vector<8x16xf32>
    %cst_81 = arith.constant 1.000000e+00 : f32
    %279 = vector.broadcast %cst_81 : f32 to vector<8x16xf32>
    %280 = arith.addf %278, %279 : vector<8x16xf32>
    %cst_82 = arith.constant 5.000000e-01 : f32
    %281 = vector.broadcast %cst_82 : f32 to vector<8x16xf32>
    %282 = arith.mulf %281, %280 : vector<8x16xf32>
    %283 = vector.extract_strided_slice %272 {offsets = [0, 32], sizes = [8, 16], strides = [1, 1]} : vector<8x64xf32> to vector<8x16xf32>
    %284 = vector.extract_strided_slice %272 {offsets = [0, 48], sizes = [8, 16], strides = [1, 1]} : vector<8x64xf32> to vector<8x16xf32>
    %cst_83 = arith.constant 1.000000e+00 : f32
    %285 = vector.broadcast %cst_83 : f32 to vector<8x16xf32>
    %286 = arith.addf %284, %285 : vector<8x16xf32>
    %cst_84 = arith.constant 5.000000e-01 : f32
    %287 = vector.broadcast %cst_84 : f32 to vector<8x16xf32>
    %288 = arith.mulf %287, %286 : vector<8x16xf32>
    %289 = arith.mulf %282, %265 : vector<8x16xf32>
    %290 = arith.mulf %277, %283 : vector<8x16xf32>
    %291 = arith.addf %289, %290 : vector<8x16xf32>
    %292 = math.tanh %291 : vector<8x16xf32>
    %293 = arith.mulf %288, %292 : vector<8x16xf32>
    %294 = vector.extract_strided_slice %109 {offsets = [56, 0], sizes = [8, 64], strides = [1, 1]} : vector<64x64xf32> to vector<8x64xf32>
    %295 = arith.truncf %293 : vector<8x16xf32> to vector<8x16xbf16>
    %cst_85 = arith.constant dense<0.000000e+00> : vector<8x64xf32>
    %296 = tpu.matmul %295, %2, %cst_85 {dimension_numbers = #tpu.dot_dimension_numbers<[1], [0], [0], [1], [0, 0, 1, 1], [], []>} : vector<8x16xbf16>, vector<16x64xbf16>, vector<8x64xf32> -> vector<8x64xf32>
    %297 = arith.addf %294, %296 : vector<8x64xf32>
    %298 = math.tanh %297 : vector<8x64xf32>
    %299 = vector.extract_strided_slice %298 {offsets = [0, 0], sizes = [8, 16], strides = [1, 1]} : vector<8x64xf32> to vector<8x16xf32>
    %cst_86 = arith.constant 1.000000e+00 : f32
    %300 = vector.broadcast %cst_86 : f32 to vector<8x16xf32>
    %301 = arith.addf %299, %300 : vector<8x16xf32>
    %cst_87 = arith.constant 5.000000e-01 : f32
    %302 = vector.broadcast %cst_87 : f32 to vector<8x16xf32>
    %303 = arith.mulf %302, %301 : vector<8x16xf32>
    %304 = vector.extract_strided_slice %298 {offsets = [0, 16], sizes = [8, 16], strides = [1, 1]} : vector<8x64xf32> to vector<8x16xf32>
    %cst_88 = arith.constant 1.000000e+00 : f32
    %305 = vector.broadcast %cst_88 : f32 to vector<8x16xf32>
    %306 = arith.addf %304, %305 : vector<8x16xf32>
    %cst_89 = arith.constant 5.000000e-01 : f32
    %307 = vector.broadcast %cst_89 : f32 to vector<8x16xf32>
    %308 = arith.mulf %307, %306 : vector<8x16xf32>
    %309 = vector.extract_strided_slice %298 {offsets = [0, 32], sizes = [8, 16], strides = [1, 1]} : vector<8x64xf32> to vector<8x16xf32>
    %310 = vector.extract_strided_slice %298 {offsets = [0, 48], sizes = [8, 16], strides = [1, 1]} : vector<8x64xf32> to vector<8x16xf32>
    %cst_90 = arith.constant 1.000000e+00 : f32
    %311 = vector.broadcast %cst_90 : f32 to vector<8x16xf32>
    %312 = arith.addf %310, %311 : vector<8x16xf32>
    %cst_91 = arith.constant 5.000000e-01 : f32
    %313 = vector.broadcast %cst_91 : f32 to vector<8x16xf32>
    %314 = arith.mulf %313, %312 : vector<8x16xf32>
    %315 = arith.mulf %308, %291 : vector<8x16xf32>
    %316 = arith.mulf %303, %309 : vector<8x16xf32>
    %317 = arith.addf %315, %316 : vector<8x16xf32>
    %318 = math.tanh %317 : vector<8x16xf32>
    %319 = arith.mulf %314, %318 : vector<8x16xf32>
    %320 = vector.extract_strided_slice %108 {offsets = [56, 64], sizes = [8, 64], strides = [1, 1]} : vector<64x128xf32> to vector<8x64xf32>
    %cst_92 = arith.constant 0.000000e+00 : f32
    %321 = vector.broadcast %cst_92 : f32 to vector<8x16xf32>
    %322 = math.tanh %320 : vector<8x64xf32>
    %323 = vector.extract_strided_slice %322 {offsets = [0, 0], sizes = [8, 16], strides = [1, 1]} : vector<8x64xf32> to vector<8x16xf32>
    %cst_93 = arith.constant 1.000000e+00 : f32
    %324 = vector.broadcast %cst_93 : f32 to vector<8x16xf32>
    %325 = arith.addf %323, %324 : vector<8x16xf32>
    %cst_94 = arith.constant 5.000000e-01 : f32
    %326 = vector.broadcast %cst_94 : f32 to vector<8x16xf32>
    %327 = arith.mulf %326, %325 : vector<8x16xf32>
    %328 = vector.extract_strided_slice %322 {offsets = [0, 16], sizes = [8, 16], strides = [1, 1]} : vector<8x64xf32> to vector<8x16xf32>
    %cst_95 = arith.constant 1.000000e+00 : f32
    %329 = vector.broadcast %cst_95 : f32 to vector<8x16xf32>
    %330 = arith.addf %328, %329 : vector<8x16xf32>
    %cst_96 = arith.constant 5.000000e-01 : f32
    %331 = vector.broadcast %cst_96 : f32 to vector<8x16xf32>
    %332 = arith.mulf %331, %330 : vector<8x16xf32>
    %333 = vector.extract_strided_slice %322 {offsets = [0, 32], sizes = [8, 16], strides = [1, 1]} : vector<8x64xf32> to vector<8x16xf32>
    %334 = vector.extract_strided_slice %322 {offsets = [0, 48], sizes = [8, 16], strides = [1, 1]} : vector<8x64xf32> to vector<8x16xf32>
    %cst_97 = arith.constant 1.000000e+00 : f32
    %335 = vector.broadcast %cst_97 : f32 to vector<8x16xf32>
    %336 = arith.addf %334, %335 : vector<8x16xf32>
    %cst_98 = arith.constant 5.000000e-01 : f32
    %337 = vector.broadcast %cst_98 : f32 to vector<8x16xf32>
    %338 = arith.mulf %337, %336 : vector<8x16xf32>
    %339 = arith.mulf %332, %321 : vector<8x16xf32>
    %340 = arith.mulf %327, %333 : vector<8x16xf32>
    %341 = arith.addf %339, %340 : vector<8x16xf32>
    %342 = math.tanh %341 : vector<8x16xf32>
    %343 = arith.mulf %338, %342 : vector<8x16xf32>
    %344 = arith.truncf %319 : vector<8x16xf32> to vector<8x16xbf16>
    %c0_99 = arith.constant 0 : index
    %c0_100 = arith.constant 0 : index
    %345 = vector.load %arg6[%c0_99, %c0_100] : memref<16x8xbf16, #tpu.memory_space<vmem>>, vector<16x8xbf16>
    %cst_101 = arith.constant dense<0.000000e+00> : vector<8x8xf32>
    %346 = tpu.matmul %344, %345, %cst_101 {dimension_numbers = #tpu.dot_dimension_numbers<[1], [0], [0], [1], [0, 0, 1, 1], [], []>} : vector<8x16xbf16>, vector<16x8xbf16>, vector<8x8xf32> -> vector<8x8xf32>
    %347 = arith.truncf %343 : vector<8x16xf32> to vector<8x16xbf16>
    %c0_102 = arith.constant 0 : index
    %c0_103 = arith.constant 0 : index
    %348 = vector.load %arg7[%c0_102, %c0_103] : memref<16x8xbf16, #tpu.memory_space<vmem>>, vector<16x8xbf16>
    %cst_104 = arith.constant dense<0.000000e+00> : vector<8x8xf32>
    %349 = tpu.matmul %347, %348, %cst_104 {dimension_numbers = #tpu.dot_dimension_numbers<[1], [0], [0], [1], [0, 0, 1, 1], [], []>} : vector<8x16xbf16>, vector<16x8xbf16>, vector<8x8xf32> -> vector<8x8xf32>
    %350 = arith.addf %346, %349 : vector<8x8xf32>
    %c0_105 = arith.constant 0 : index
    %c0_106 = arith.constant 0 : index
    %351 = vector.load %arg8[%c0_105, %c0_106] : memref<1x8xf32, #tpu.memory_space<vmem>>, vector<1x8xf32>
    %352 = vector.broadcast %351 : vector<1x8xf32> to vector<8x8xf32>
    %353 = arith.addf %350, %352 : vector<8x8xf32>
    %cst_107 = arith.constant dense<0xFF800000> : vector<8xf32>
    %354 = vector.multi_reduction <maximumf>, %353, %cst_107 [1] : vector<8x8xf32> to vector<8xf32>
    %355 = vector.shape_cast %354 : vector<8xf32> to vector<8x1xf32>
    %356 = vector.broadcast %355 : vector<8x1xf32> to vector<8x8xf32>
    %357 = arith.subf %353, %356 : vector<8x8xf32>
    %358 = math.exp %357 : vector<8x8xf32>
    %cst_108 = arith.constant dense<0.000000e+00> : vector<8xf32>
    %359 = vector.multi_reduction <add>, %358, %cst_108 [1] : vector<8x8xf32> to vector<8xf32>
    %360 = vector.shape_cast %359 : vector<8xf32> to vector<8x1xf32>
    %361 = math.log %360 : vector<8x1xf32>
    %362 = vector.broadcast %361 : vector<8x1xf32> to vector<8x8xf32>
    %363 = arith.subf %357, %362 : vector<8x8xf32>
    %364 = vector.extract_strided_slice %363 {offsets = [0, 0], sizes = [2, 8], strides = [1, 1]} : vector<8x8xf32> to vector<2x8xf32>
    %c0_109 = arith.constant 0 : index
    %c0_110 = arith.constant 0 : index
    %365 = vector.load %arg9[%c0_109, %c0_110] : memref<2x8xf32, #tpu.memory_space<vmem>>, vector<2x8xf32>
    tpu.vector_store %arg9[%c0_109, %c0_110], %364 {strides = array<i32>} : memref<2x8xf32, #tpu.memory_space<vmem>>, vector<2x8xf32>,
    return
  }
  func.func @transform_0(%arg0: i32, %arg1: memref<16xi32, #tpu.memory_space<smem>>) -> (i32, i32) {
    %c0_i32 = arith.constant 0 : i32
    %c0_i32_0 = arith.constant 0 : i32
    %c0_i32_1 = arith.constant 0 : i32
    return %c0_i32, %c0_i32_0 : i32, i32
  }
  func.func @transform_1(%arg0: i32, %arg1: memref<16xi32, #tpu.memory_space<smem>>) -> (i32, i32) {
    %c0_i32 = arith.constant 0 : i32
    %c0_i32_0 = arith.constant 0 : i32
    %c0_i32_1 = arith.constant 0 : i32
    return %c0_i32, %c0_i32_0 : i32, i32
  }
  func.func @transform_2(%arg0: i32, %arg1: memref<16xi32, #tpu.memory_space<smem>>) -> (i32, i32) {
    %c0_i32 = arith.constant 0 : i32
    %c0_i32_0 = arith.constant 0 : i32
    %c0_i32_1 = arith.constant 0 : i32
    return %c0_i32, %c0_i32_0 : i32, i32
  }
  func.func @transform_3(%arg0: i32, %arg1: memref<16xi32, #tpu.memory_space<smem>>) -> (i32, i32) {
    %c0_i32 = arith.constant 0 : i32
    %c0_i32_0 = arith.constant 0 : i32
    %c0_i32_1 = arith.constant 0 : i32
    return %c0_i32, %c0_i32_0 : i32, i32
  }
  func.func @transform_4(%arg0: i32, %arg1: memref<16xi32, #tpu.memory_space<smem>>) -> (i32, i32) {
    %c0_i32 = arith.constant 0 : i32
    %c0_i32_0 = arith.constant 0 : i32
    %c0_i32_1 = arith.constant 0 : i32
    return %c0_i32, %c0_i32_0 : i32, i32
  }
  func.func @transform_5(%arg0: i32, %arg1: memref<16xi32, #tpu.memory_space<smem>>) -> (i32, i32) {
    %c0_i32 = arith.constant 0 : i32
    %c0_i32_0 = arith.constant 0 : i32
    %c0_i32_1 = arith.constant 0 : i32
    return %c0_i32, %c0_i32_0 : i32, i32
  }
  func.func @transform_6(%arg0: i32, %arg1: memref<16xi32, #tpu.memory_space<smem>>) -> (i32, i32) {
    %c0_i32 = arith.constant 0 : i32
    %c0_i32_0 = arith.constant 0 : i32
    %c0_i32_1 = arith.constant 0 : i32
    return %c0_i32, %c0_i32_0 : i32, i32
  }
  func.func @transform_7(%arg0: i32, %arg1: memref<16xi32, #tpu.memory_space<smem>>) -> (i32, i32) {
    %c0_i32 = arith.constant 0 : i32
    %c0_i32_0 = arith.constant 0 : i32
    %c0_i32_1 = arith.constant 0 : i32
    return %c0_i32, %c0_i32_0 : i32, i32
  }
}

</mosaic_0001>

<llo_original>
// kernel: dct_forward.1
$region0: #{dct_forward.1}
  #allocation0 [shape = 'u32[]', space=smem, size = 0x4, offset = 0x4, fixed_abs, tag = 'smem constant byte address 0x4 - core index']
  #allocation1 [shape = 'u32[144,128]{1,0:T(1,128)}', space=vmem, size = 0x12000, scoped, tag = 'internal scratch']
  #allocation2 [shape = 'f32[64,128]{1,0:T(8,128)}', space=vmem, size = 0x8000, scoped, tag = 'scratch operand']
  #allocation3 [shape = 's32[1]{0}', space=sflag, size = 0x4, scoped, tag = 'scoped memory for dct_forward.1']
  #allocation4 [shape = 'u8[512]{0}', space=smem, size = 0x200, scoped, tag = 'prefetched SMEM operand 0']
  %s0 = inlined_call_operand.vmem [shape: s32[16], index: 0, kind: input, shape index: {}]
  %s1 = inlined_call_operand.vmem [shape: f32[128,32], index: 1, kind: input, shape index: {}]
  %s2 = inlined_call_operand.vmem [shape: bf16[32,128], index: 2, kind: input, shape index: {}]
  %s3 = inlined_call_operand.vmem [shape: bf16[16,64], index: 3, kind: input, shape index: {}]
  %s4 = inlined_call_operand.vmem [shape: f32[1,128], index: 4, kind: input, shape index: {}]
  %s5 = inlined_call_operand.vmem [shape: bf16[16,8], index: 5, kind: input, shape index: {}]
  %s6 = inlined_call_operand.vmem [shape: bf16[16,8], index: 6, kind: input, shape index: {}]
  %s7 = inlined_call_operand.vmem [shape: f32[1,8], index: 7, kind: input, shape index: {}]
  %s8 = inlined_call_operand.hbm [shape: f32[2,8], index: 8, kind: output, shape index: {}]
  %s9 = sld [smem:[#allocation0]]
  $region38: #{dct_forward.1} parent=0
    _
  %s11 = ssub.s32 1, %s9
  %s12 = scalar_select 0, %s11, %s9
  %s13 = sshll.u32 %s0, 4
  %s14 = int_to_ptr.vmem [resolvable:$true] %s13
  %16 = dma.vmem_to_smem %s14, 16, [#allocation4], [#allocation3]
  %17 = dma.done [#allocation3], 16
  %18 = sfence
  $region1: #{dct_forward.1} parent=0
    #allocation5 [shape = 'u8[1024]{0}', space=vmem, size = 0x400, scoped, tag = 'output window, operand 0, single buffered']
    #allocation6 [shape = 's32[1]{0}', space=sflag, size = 0x4, scoped, tag = 'scoped memory for dct_forward.1']
    %19 = vsyncpa [#allocation6], 0
    // Predicated region
    $region2: #{dct_forward.1} parent=1 // pred_check
      _
    $region3: #{dct_forward.1} parent=1 // pred_check_branch
      %21 = sbr.rel (0) target = $region5
    $region4: #{dct_forward.1} parent=1 // pred_region
      _
    $region5: #{dct_forward.1} parent=1 // pred_fallthru
      _
    // Predicated region
    $region6: #{dct_forward.1} parent=1 // pred_check
      _
    $region7: #{dct_forward.1} parent=1 // pred_check_branch
      %23 = sbr.rel (0) target = $region9
    $region8: #{dct_forward.1} parent=1 // pred_region
      _
    $region9: #{dct_forward.1} parent=1 // pred_fallthru
      _
    // Predicated region
    $region10: #{dct_forward.1} parent=1 // pred_check
      _
    $region11: #{dct_forward.1} parent=1 // pred_check_branch
      %25 = sbr.rel (0) target = $region13
    $region12: #{dct_forward.1} parent=1 // pred_region
      _
    $region13: #{dct_forward.1} parent=1 // pred_fallthru
      _
    // Predicated region
    $region14: #{dct_forward.1} parent=1 // pred_check
      _
    $region15: #{dct_forward.1} parent=1 // pred_check_branch
      %27 = sbr.rel (0) target = $region17
    $region16: #{dct_forward.1} parent=1 // pred_region
      _
    $region17: #{dct_forward.1} parent=1 // pred_fallthru
      _
    // Predicated region
    $region18: #{dct_forward.1} parent=1 // pred_check
      _
    $region19: #{dct_forward.1} parent=1 // pred_check_branch
      %29 = sbr.rel (0) target = $region21
    $region20: #{dct_forward.1} parent=1 // pred_region
      _
    $region21: #{dct_forward.1} parent=1 // pred_fallthru
      _
    // Predicated region
    $region22: #{dct_forward.1} parent=1 // pred_check
      _
    $region23: #{dct_forward.1} parent=1 // pred_check_branch
      %31 = sbr.rel (0) target = $region25
    $region24: #{dct_forward.1} parent=1 // pred_region
      _
    $region25: #{dct_forward.1} parent=1 // pred_fallthru
      _
    // Predicated region
    $region26: #{dct_forward.1} parent=1 // pred_check
      _
    $region27: #{dct_forward.1} parent=1 // pred_check_branch
      %33 = sbr.rel (0) target = $region29
    $region28: #{dct_forward.1} parent=1 // pred_region
      _
    $region29: #{dct_forward.1} parent=1 // pred_fallthru
      _
    %v35 = vlaneseq
    %v36 = vand.u32 %v35, 127
    %v37 = vld [vmem:[%s2] sm:$0xf]
    %v38 = vld [vmem:[%s2 + $0x4] sm:$0xf]
    %v39 = vld [vmem:[%s2 + $0x8] sm:$0xf]
    %v40 = vld [vmem:[%s2 + $0xc] sm:$0xf]
    %v41 = vld [vmem:[%s3] sm:$0xf]
    %v42 = vld [vmem:[%s3 + $0x4] sm:$0xf]
    %43 = vst [vmem:[#allocation2] sm:$0xff] 0.0
    %44 = vst [vmem:[#allocation2 + $0x8] sm:$0xff] 0.0
    %45 = vst [vmem:[#allocation2 + $0x10] sm:$0xff] 0.0
    %46 = vst [vmem:[#allocation2 + $0x18] sm:$0xff] 0.0
    %47 = vst [vmem:[#allocation2 + $0x20] sm:$0xff] 0.0
    %48 = vst [vmem:[#allocation2 + $0x28] sm:$0xff] 0.0
    %49 = vst [vmem:[#allocation2 + $0x30] sm:$0xff] 0.0
    %50 = vst [vmem:[#allocation2 + $0x38] sm:$0xff] 0.0
    %s51 = sld [smem:[#allocation4]]
    %v52 = vstv %s51
    %vm53 = vcmp.eq.s32.totalorder %v36, %v52
    %v54 = vsel %vm53, 1, 0
    %v55 = vcvt.s32.f32 %v54
    %56 = vst [vmem:[#allocation2] sm:$0x1] %v55
    %s57 = sld [smem:[#allocation4 + $0x1]]
    %v58 = vstv %s57
    %vm59 = vcmp.eq.s32.totalorder %v36, %v58
    %v60 = vsel %vm59, 1, 0
    %v61 = vcvt.s32.f32 %v60
    %62 = vst [vmem:[#allocation2 + $0x1] sm:$0x1] %v61
    %s63 = sld [smem:[#allocation4 + $0x2]]
    %v64 = vstv %s63
    %vm65 = vcmp.eq.s32.totalorder %v36, %v64
    %v66 = vsel %vm65, 1, 0
    %v67 = vcvt.s32.f32 %v66
    %68 = vst [vmem:[#allocation2 + $0x8] sm:$0x1] %v67
    %s69 = sld [smem:[#allocation4 + $0x3]]
    %v70 = vstv %s69
    %vm71 = vcmp.eq.s32.totalorder %v36, %v70
    %v72 = vsel %vm71, 1, 0
    %v73 = vcvt.s32.f32 %v72
    %74 = vst [vmem:[#allocation2 + $0x9] sm:$0x1] %v73
    %s75 = sld [smem:[#allocation4 + $0x4]]
    %v76 = vstv %s75
    %vm77 = vcmp.eq.s32.totalorder %v36, %v76
    %v78 = vsel %vm77, 1, 0
    %v79 = vcvt.s32.f32 %v78
    %80 = vst [vmem:[#allocation2 + $0x10] sm:$0x1] %v79
    %s81 = sld [smem:[#allocation4 + $0x5]]
    %v82 = vstv %s81
    %vm83 = vcmp.eq.s32.totalorder %v36, %v82
    %v84 = vsel %vm83, 1, 0
    %v85 = vcvt.s32.f32 %v84
    %86 = vst [vmem:[#allocation2 + $0x11] sm:$0x1] %v85
    %s87 = sld [smem:[#allocation4 + $0x6]]
    %v88 = vstv %s87
    %vm89 = vcmp.eq.s32.totalorder %v36, %v88
    %v90 = vsel %vm89, 1, 0
    %v91 = vcvt.s32.f32 %v90
    %92 = vst [vmem:[#allocation2 + $0x18] sm:$0x1] %v91
    %s93 = sld [smem:[#allocation4 + $0x7]]
    %v94 = vstv %s93
    %vm95 = vcmp.eq.s32.totalorder %v36, %v94
    %v96 = vsel %vm95, 1, 0
    %v97 = vcvt.s32.f32 %v96
    %98 = vst [vmem:[#allocation2 + $0x19] sm:$0x1] %v97
    %s99 = sld [smem:[#allocation4 + $0x8]]
    %v100 = vstv %s99
    %vm101 = vcmp.eq.s32.totalorder %v36, %v100
    %v102 = vsel %vm101, 1, 0
    %v103 = vcvt.s32.f32 %v102
    %104 = vst [vmem:[#allocation2 + $0x20] sm:$0x1] %v103
    %s105 = sld [smem:[#allocation4 + $0x9]]
    %v106 = vstv %s105
    %vm107 = vcmp.eq.s32.totalorder %v36, %v106
    %v108 = vsel %vm107, 1, 0
    %v109 = vcvt.s32.f32 %v108
    %110 = vst [vmem:[#allocation2 + $0x21] sm:$0x1] %v109
    %s111 = sld [smem:[#allocation4 + $0xa]]
    %v112 = vstv %s111
    %vm113 = vcmp.eq.s32.totalorder %v36, %v112
    %v114 = vsel %vm113, 1, 0
    %v115 = vcvt.s32.f32 %v114
    %116 = vst [vmem:[#allocation2 + $0x28] sm:$0x1] %v115
    %s117 = sld [smem:[#allocation4 + $0xb]]
    %v118 = vstv %s117
    %vm119 = vcmp.eq.s32.totalorder %v36, %v118
    %v120 = vsel %vm119, 1, 0
    %v121 = vcvt.s32.f32 %v120
    %122 = vst [vmem:[#allocation2 + $0x29] sm:$0x1] %v121
    %s123 = sld [smem:[#allocation4 + $0xc]]
    %v124 = vstv %s123
    %vm125 = vcmp.eq.s32.totalorder %v36, %v124
    %v126 = vsel %vm125, 1, 0
    %v127 = vcvt.s32.f32 %v126
    %128 = vst [vmem:[#allocation2 + $0x30] sm:$0x1] %v127
    %s129 = sld [smem:[#allocation4 + $0xd]]
    %v130 = vstv %s129
    %vm131 = vcmp.eq.s32.totalorder %v36, %v130
    %v132 = vsel %vm131, 1, 0
    %v133 = vcvt.s32.f32 %v132
    %134 = vst [vmem:[#allocation2 + $0x31] sm:$0x1] %v133
    %s135 = sld [smem:[#allocation4 + $0xe]]
    %v136 = vstv %s135
    %vm137 = vcmp.eq.s32.totalorder %v36, %v136
    %v138 = vsel %vm137, 1, 0
    %v139 = vcvt.s32.f32 %v138
    %140 = vst [vmem:[#allocation2 + $0x38] sm:$0x1] %v139
    %s141 = sld [smem:[#allocation4 + $0xf]]
    %v142 = vstv %s141
    %vm143 = vcmp.eq.s32.totalorder %v36, %v142
    %v144 = vsel %vm143, 1, 0
    %v145 = vcvt.s32.f32 %v144
    %146 = vst [vmem:[#allocation2 + $0x39] sm:$0x1] %v145
    %v147 = vld [vmem:[#allocation2] sm:$0xff]
    %v148 = vld [vmem:[#allocation2 + $0x8] sm:$0xff]
    %v149 = vld [vmem:[#allocation2 + $0x10] sm:$0xff]
    %v150 = vld [vmem:[#allocation2 + $0x18] sm:$0xff]
    %v151 = vld [vmem:[#allocation2 + $0x20] sm:$0xff]
    %v152 = vld [vmem:[#allocation2 + $0x28] sm:$0xff]
    %v153 = vld [vmem:[#allocation2 + $0x30] sm:$0xff]
    %v154 = vld [vmem:[#allocation2 + $0x38] sm:$0xff]
    %v155 = vld [vmem:[%s1] sm:$0xff]
    %v156 = vld [vmem:[%s1 + $0x8] sm:$0xff]
    %v157 = vld [vmem:[%s1 + $0x10] sm:$0xff]
    %v158 = vld [vmem:[%s1 + $0x18] sm:$0xff]
    %v159 = vld [vmem:[%s1 + $0x20] sm:$0xff]
    %v160 = vld [vmem:[%s1 + $0x28] sm:$0xff]
    %v161 = vld [vmem:[%s1 + $0x30] sm:$0xff]
    %v162 = vld [vmem:[%s1 + $0x38] sm:$0xff]
    %v163 = vld [vmem:[%s1 + $0x40] sm:$0xff]
    %v164 = vld [vmem:[%s1 + $0x48] sm:$0xff]
    %v165 = vld [vmem:[%s1 + $0x50] sm:$0xff]
    %v166 = vld [vmem:[%s1 + $0x58] sm:$0xff]
    %v167 = vld [vmem:[%s1 + $0x60] sm:$0xff]
    %v168 = vld [vmem:[%s1 + $0x68] sm:$0xff]
    %v169 = vld [vmem:[%s1 + $0x70] sm:$0xff]
    %v170 = vld [vmem:[%s1 + $0x78] sm:$0xff]
    %171 = vmatprep.subr.mxu0 0.0
    %172 = vmatpush1.msra.mxu0 %v155
    %173 = vmatprep.subr.mxu0 0.0
    %174 = vmatpush1.msra.mxu0 %v156
    %175 = vmatprep.subr.mxu0 0.0
    %176 = vmatpush1.msra.mxu0 %v157
    %177 = vmatprep.subr.mxu0 0.0
    %178 = vmatpush1.msra.mxu0 %v158
    %179 = vmatprep.subr.mxu0 0.0
    %180 = vmatpush1.msra.mxu0 %v159
    %181 = vmatprep.subr.mxu0 0.0
    %182 = vmatpush1.msra.mxu0 %v160
    %183 = vmatprep.subr.mxu0 0.0
    %184 = vmatpush1.msra.mxu0 %v161
    %185 = vmatprep.subr.mxu0 0.0
    %186 = vmatpush1.msra.mxu0 %v162
    %187 = vmatprep.subr.mxu0 0.0
    %188 = vmatpush1.msra.mxu0 %v163
    %189 = vmatprep.subr.mxu0 0.0
    %190 = vmatpush1.msra.mxu0 %v164
    %191 = vmatprep.subr.mxu0 0.0
    %192 = vmatpush1.msra.mxu0 %v165
    %193 = vmatprep.subr.mxu0 0.0
    %194 = vmatpush1.msra.mxu0 %v166
    %195 = vmatprep.subr.mxu0 0.0
    %196 = vmatpush1.msra.mxu0 %v167
    %197 = vmatprep.subr.mxu0 0.0
    %198 = vmatpush1.msra.mxu0 %v168
    %199 = vmatprep.subr.mxu0 0.0
    %200 = vmatpush1.msra.mxu0 %v169
    %201 = vmatprep.subr.mxu0 0.0
    %202 = vmatpush1.msra.mxu0 %v170
    %203 = vmatprep.subr.mxu0 0.0
    %204 = vmatpush1.msra.mxu0 0.0
    %205 = vmatprep.subr.mxu0 0.0
    %206 = vmatpush1.msra.mxu0 0.0
    %207 = vmatprep.subr.mxu0 0.0
    %208 = vmatpush1.msra.mxu0 0.0
    %209 = vmatprep.subr.mxu0 0.0
    %210 = vmatpush1.msra.mxu0 0.0
    %211 = vmatprep.subr.mxu0 0.0
    %212 = vmatpush1.msra.mxu0 0.0
    %213 = vmatprep.subr.mxu0 0.0
    %214 = vmatpush1.msra.mxu0 0.0
    %215 = vmatprep.subr.mxu0 0.0
    %216 = vmatpush1.msra.mxu0 0.0
    %217 = vmatprep.subr.mxu0 0.0
    %218 = vmatpush1.msra.mxu0 0.0
    %219 = vmatprep.subr.mxu0 0.0
    %220 = vmatpush1.msra.mxu0 0.0
    %221 = vmatprep.subr.mxu0 0.0
    %222 = vmatpush1.msra.mxu0 0.0
    %223 = vmatprep.subr.mxu0 0.0
    %224 = vmatpush1.msra.mxu0 0.0
    %225 = vmatprep.subr.mxu0 0.0
    %226 = vmatpush1.msra.mxu0 0.0
    %227 = vmatprep.subr.mxu0 0.0
    %228 = vmatpush1.msra.mxu0 0.0
    %229 = vmatprep.subr.mxu0 0.0
    %230 = vmatpush1.msra.mxu0 0.0
    %231 = vmatprep.subr.mxu0 0.0
    %232 = vmatpush1.msra.mxu0 0.0
    %233 = vmatprep.subr.mxu0 0.0
    %234 = vmatpush1.msra.mxu0 0.0
    %235 = vmatprep.mubr.f32.mxu0 0.0
    %236 = vmatmul.mubr.f32.gmra.mrb[0].mxu0 %v147
    %v237 = vpop.f32.mrb[0].mxu0
    %v238 = vadd.f32 0.0, %v237
    %v239 = vpop.f32.mrb[0].mxu0
    %240 = vmatprep.mubr.f32.mxu0 0.0
    %241 = vmatmul.mubr.f32.gmra.mrb[0].mxu0 %v148
    %v242 = vpop.f32.mrb[0].mxu0
    %v243 = vadd.f32 0.0, %v242
    %v244 = vpop.f32.mrb[0].mxu0
    %245 = vmatprep.mubr.f32.mxu0 0.0
    %246 = vmatmul.mubr.f32.gmra.mrb[0].mxu0 %v149
    %v247 = vpop.f32.mrb[0].mxu0
    %v248 = vadd.f32 0.0, %v247
    %v249 = vpop.f32.mrb[0].mxu0
    %250 = vmatprep.mubr.f32.mxu0 0.0
    %251 = vmatmul.mubr.f32.gmra.mrb[0].mxu0 %v150
    %v252 = vpop.f32.mrb[0].mxu0
    %v253 = vadd.f32 0.0, %v252
    %v254 = vpop.f32.mrb[0].mxu0
    %255 = vmatprep.mubr.f32.mxu0 0.0
    %256 = vmatmul.mubr.f32.gmra.mrb[0].mxu0 %v151
    %v257 = vpop.f32.mrb[0].mxu0
    %v258 = vadd.f32 0.0, %v257
    %v259 = vpop.f32.mrb[0].mxu0
    %260 = vmatprep.mubr.f32.mxu0 0.0
    %261 = vmatmul.mubr.f32.gmra.mrb[0].mxu0 %v152
    %v262 = vpop.f32.mrb[0].mxu0
    %v263 = vadd.f32 0.0, %v262
    %v264 = vpop.f32.mrb[0].mxu0
    %265 = vmatprep.mubr.f32.mxu0 0.0
    %266 = vmatmul.mubr.f32.gmra.mrb[0].mxu0 %v153
    %v267 = vpop.f32.mrb[0].mxu0
    %v268 = vadd.f32 0.0, %v267
    %v269 = vpop.f32.mrb[0].mxu0
    %270 = vmatprep.mubr.f32.mxu0 0.0
    %271 = vmatmul.mubr.f32.gmra.mrb[0].mxu0 %v154
    %v272 = vpop.f32.mrb[0].mxu0
    %v273 = vadd.f32 0.0, %v272
    %v274 = vpop.f32.mrb[0].mxu0
    %275 = vdwg.mxu0
    %v276 = vpack.c.bf16 %v243, %v238
    %v277 = vpack.c.bf16 %v253, %v248
    %v278 = vpack.c.bf16 %v263, %v258
    %v279 = vpack.c.bf16 %v273, %v268
    %v280 = vld [vmem:[%s4] sm:$0x1]
    %v282 = vlaneseq
    %v283 = vshrl.u32 %v282, 7
    %v284 = vsub.s32 0, %v283
    %v285 = vrot.slane %v280, %v284
    %v291 = vunpack.c.l.b16 %v37
    %v292 = vunpack.c.l.b16 %v38
    %v293 = vunpack.c.l.b16 %v39
    %v294 = vunpack.c.l.b16 %v40
    %v295 = vpack.c.b16 %v292, %v291
    %v296 = vpack.c.b16 %v294, %v293
    %vm299 = vcmask 261120
    %v301 = vsel %vm299, %v276, 0
    %v304 = vsel %vm299, %v277, 0
    %v307 = vsel %vm299, %v278, 0
    %v310 = vsel %vm299, %v279, 0
    %312 = vmatprep.subr.bf16.mxu0 0
    %313 = vmatpush1.bf16.msra.mxu0 %v295
    %314 = vmatprep.subr.bf16.mxu0 0
    %315 = vmatpush1.bf16.msra.mxu0 %v296
    %316 = vmatprep.subr.bf16.mxu0 0
    %317 = vmatpush1.bf16.msra.mxu0 0
    %318 = vmatprep.subr.bf16.mxu0 0
    %319 = vmatpush1.bf16.msra.mxu0 0
    %320 = vmatprep.subr.bf16.mxu0 0
    %321 = vmatpush1.bf16.msra.mxu0 0
    %322 = vmatprep.subr.bf16.mxu0 0
    %323 = vmatpush1.bf16.msra.mxu0 0
    %324 = vmatprep.subr.bf16.mxu0 0
    %325 = vmatpush1.bf16.msra.mxu0 0
    %326 = vmatprep.subr.bf16.mxu0 0
    %327 = vmatpush1.bf16.msra.mxu0 0
    %328 = vmatprep.subr.bf16.mxu0 0
    %329 = vmatpush1.bf16.msra.mxu0 0
    %330 = vmatprep.subr.bf16.mxu0 0
    %331 = vmatpush1.bf16.msra.mxu0 0
    %332 = vmatprep.subr.bf16.mxu0 0
    %333 = vmatpush1.bf16.msra.mxu0 0
    %334 = vmatprep.subr.bf16.mxu0 0
    %335 = vmatpush1.bf16.msra.mxu0 0
    %336 = vmatprep.subr.bf16.mxu0 0
    %337 = vmatpush1.bf16.msra.mxu0 0
    %338 = vmatprep.subr.bf16.mxu0 0
    %339 = vmatpush1.bf16.msra.mxu0 0
    %340 = vmatprep.subr.bf16.mxu0 0
    %341 = vmatpush1.bf16.msra.mxu0 0
    %342 = vmatprep.subr.bf16.mxu0 0
    %343 = vmatpush1.bf16.msra.mxu0 0
    %344 = vmatprep.mubr.bf16.mxu0 0
    %345 = vmatmul.mubr.bf16.gmra.mrb[0].mxu0 %v301
    %v346 = vpop.f32.mrb[0].mxu0
    %v347 = vadd.f32 %v285, %v346
    %v348 = vpop.f32.mrb[0].mxu0
    %v349 = vpop.f32.mrb[0].mxu0
    %v350 = vadd.f32 %v285, %v349
    %v351 = vpop.f32.mrb[0].mxu0
    %352 = vmatprep.mubr.bf16.mxu0 0
    %353 = vmatmul.mubr.bf16.gmra.mrb[0].mxu0 %v304
    %v354 = vpop.f32.mrb[0].mxu0
    %v355 = vadd.f32 %v285, %v354
    %v356 = vpop.f32.mrb[0].mxu0
    %v357 = vpop.f32.mrb[0].mxu0
    %v358 = vadd.f32 %v285, %v357
    %v359 = vpop.f32.mrb[0].mxu0
    %360 = vmatprep.mubr.bf16.mxu0 0
    %361 = vmatmul.mubr.bf16.gmra.mrb[0].mxu0 %v307
    %v362 = vpop.f32.mrb[0].mxu0
    %v363 = vadd.f32 %v285, %v362
    %v364 = vpop.f32.mrb[0].mxu0
    %v365 = vpop.f32.mrb[0].mxu0
    %v366 = vadd.f32 %v285, %v365
    %v367 = vpop.f32.mrb[0].mxu0
    %368 = vmatprep.mubr.bf16.mxu0 0
    %369 = vmatmul.mubr.bf16.gmra.mrb[0].mxu0 %v310
    %v370 = vpop.f32.mrb[0].mxu0
    %v371 = vadd.f32 %v285, %v370
    %v372 = vpop.f32.mrb[0].mxu0
    %v373 = vpop.f32.mrb[0].mxu0
    %v374 = vadd.f32 %v285, %v373
    %v375 = vpop.f32.mrb[0].mxu0
    %376 = vdwg.mxu0
    %v379 = vunpack.c.l.b16 %v41
    %v380 = vunpack.c.l.b16 %v42
    %v381 = vpack.c.b16 %v380, %v379
    %vm383 = vcmask 130048
    %v385 = vsel %vm383, 0, 0
    %387 = vmatprep.subr.bf16.mxu0 0
    %388 = vmatpush1.bf16.msra.mxu0 %v381
    %389 = vmatprep.subr.bf16.mxu0 0
    %390 = vmatpush1.bf16.msra.mxu0 0
    %391 = vmatprep.subr.bf16.mxu0 0
    %392 = vmatpush1.bf16.msra.mxu0 0
    %393 = vmatprep.subr.bf16.mxu0 0
    %394 = vmatpush1.bf16.msra.mxu0 0
    %395 = vmatprep.subr.bf16.mxu0 0
    %396 = vmatpush1.bf16.msra.mxu0 0
    %397 = vmatprep.subr.bf16.mxu0 0
    %398 = vmatpush1.bf16.msra.mxu0 0
    %399 = vmatprep.subr.bf16.mxu0 0
    %400 = vmatpush1.bf16.msra.mxu0 0
    %401 = vmatprep.subr.bf16.mxu0 0
    %402 = vmatpush1.bf16.msra.mxu0 0
    %403 = vmatprep.subr.bf16.mxu0 0
    %404 = vmatpush1.bf16.msra.mxu0 0
    %405 = vmatprep.subr.bf16.mxu0 0
    %406 = vmatpush1.bf16.msra.mxu0 0
    %407 = vmatprep.subr.bf16.mxu0 0
    %408 = vmatpush1.bf16.msra.mxu0 0
    %409 = vmatprep.subr.bf16.mxu0 0
    %410 = vmatpush1.bf16.msra.mxu0 0
    %411 = vmatprep.subr.bf16.mxu0 0
    %412 = vmatpush1.bf16.msra.mxu0 0
    %413 = vmatprep.subr.bf16.mxu0 0
    %414 = vmatpush1.bf16.msra.mxu0 0
    %415 = vmatprep.subr.bf16.mxu0 0
    %416 = vmatpush1.bf16.msra.mxu0 0
    %417 = vmatprep.subr.bf16.mxu0 0
    %418 = vmatpush1.bf16.msra.mxu0 0
    %419 = vmatprep.mubr.bf16.mxu0 0
    %420 = vmatmul.mubr.bf16.gmra.mrb[0].mxu0 %v385
    %v421 = vpop.f32.mrb[0].mxu0
    %v422 = vadd.f32 0.0, %v421
    %v423 = vpop.f32.mrb[0].mxu0
    %v424 = vpop.f32.mrb[0].mxu0
    %v425 = vpop.f32.mrb[0].mxu0
    %426 = vdwg.mxu0
    %v427 = vadd.f32 %v347, %v422
    %v428 = vtanh.pop %v427
    %v429 = vadd.f32 %v428, 1.0
    %v430 = vmul.f32 %v429, 0.5
    %v431 = vmul.f32 %v430, 0.0
    %433 = vrot.lane.b32.xlu0 %v428, 96
    %v434 = vpop.permute.xlu0 %433
    %v436 = vmul.f32 %v430, %v434
    %438 = vrot.lane.b32.xlu0 %v436, 16
    %v439 = vpop.permute.xlu0 %438
    %v441 = vadd.f32 %v431, %v439
    %v442 = vtanh.pop %v441
    %444 = vrot.lane.b32.xlu0 %v442, 32
    %v445 = vpop.permute.xlu0 %444
    %v447 = vmul.f32 %v430, %v445
    %v448 = vpack.c.bf16 %v447, %v447
    %450 = vrot.lane.b32.xlu0 %v448, 80
    %v451 = vpop.permute.xlu0 %450
    %v453 = vsel %vm383, %v451, 0
    %455 = vmatprep.subr.bf16.mxu0 0
    %456 = vmatpush1.bf16.msra.mxu0 %v381
    %457 = vmatprep.subr.bf16.mxu0 0
    %458 = vmatpush1.bf16.msra.mxu0 0
    %459 = vmatprep.subr.bf16.mxu0 0
    %460 = vmatpush1.bf16.msra.mxu0 0
    %461 = vmatprep.subr.bf16.mxu0 0
    %462 = vmatpush1.bf16.msra.mxu0 0
    %463 = vmatprep.subr.bf16.mxu0 0
    %464 = vmatpush1.bf16.msra.mxu0 0
    %465 = vmatprep.subr.bf16.mxu0 0
    %466 = vmatpush1.bf16.msra.mxu0 0
    %467 = vmatprep.subr.bf16.mxu0 0
    %468 = vmatpush1.bf16.msra.mxu0 0
    %469 = vmatprep.subr.bf16.mxu0 0
    %470 = vmatpush1.bf16.msra.mxu0 0
    %471 = vmatprep.subr.bf16.mxu0 0
    %472 = vmatpush1.bf16.msra.mxu0 0
    %473 = vmatprep.subr.bf16.mxu0 0
    %474 = vmatpush1.bf16.msra.mxu0 0
    %475 = vmatprep.subr.bf16.mxu0 0
    %476 = vmatpush1.bf16.msra.mxu0 0
    %477 = vmatprep.subr.bf16.mxu0 0
    %478 = vmatpush1.bf16.msra.mxu0 0
    %479 = vmatprep.subr.bf16.mxu0 0
    %480 = vmatpush1.bf16.msra.mxu0 0
    %481 = vmatprep.subr.bf16.mxu0 0
    %482 = vmatpush1.bf16.msra.mxu0 0
    %483 = vmatprep.subr.bf16.mxu0 0
    %484 = vmatpush1.bf16.msra.mxu0 0
    %485 = vmatprep.subr.bf16.mxu0 0
    %486 = vmatpush1.bf16.msra.mxu0 0
    %487 = vmatprep.mubr.bf16.mxu0 0
    %488 = vmatmul.mubr.bf16.gmra.mrb[0].mxu0 %v453
    %v489 = vpop.f32.mrb[0].mxu0
    %v490 = vadd.f32 0.0, %v489
    %v491 = vpop.f32.mrb[0].mxu0
    %v492 = vpop.f32.mrb[0].mxu0
    %v493 = vpop.f32.mrb[0].mxu0
    %494 = vdwg.mxu0
    %v495 = vadd.f32 %v350, %v490
    %v496 = vtanh.pop %v495
    %v497 = vadd.f32 %v496, 1.0
    %v498 = vmul.f32 %v497, 0.5
    %v499 = vmul.f32 %v498, %v441
    %501 = vrot.lane.b32.xlu0 %v496, 96
    %v502 = vpop.permute.xlu0 %501
    %v504 = vmul.f32 %v498, %v502
    %506 = vrot.lane.b32.xlu0 %v504, 16
    %v507 = vpop.permute.xlu0 %506
    %v509 = vadd.f32 %v499, %v507
    %v510 = vtanh.pop %v509
    %512 = vrot.lane.b32.xlu0 %v510, 32
    %v513 = vpop.permute.xlu0 %512
    %v515 = vmul.f32 %v498, %v513
    %v516 = vpack.c.bf16 %v515, %v515
    %518 = vrot.lane.b32.xlu0 %v516, 80
    %v519 = vpop.permute.xlu0 %518
    %v521 = vsel %vm383, %v519, 0
    %523 = vmatprep.subr.bf16.mxu0 0
    %524 = vmatpush1.bf16.msra.mxu0 %v381
    %525 = vmatprep.subr.bf16.mxu0 0
    %526 = vmatpush1.bf16.msra.mxu0 0
    %527 = vmatprep.subr.bf16.mxu0 0
    %528 = vmatpush1.bf16.msra.mxu0 0
    %529 = vmatprep.subr.bf16.mxu0 0
    %530 = vmatpush1.bf16.msra.mxu0 0
    %531 = vmatprep.subr.bf16.mxu0 0
    %532 = vmatpush1.bf16.msra.mxu0 0
    %533 = vmatprep.subr.bf16.mxu0 0
    %534 = vmatpush1.bf16.msra.mxu0 0
    %535 = vmatprep.subr.bf16.mxu0 0
    %536 = vmatpush1.bf16.msra.mxu0 0
    %537 = vmatprep.subr.bf16.mxu0 0
    %538 = vmatpush1.bf16.msra.mxu0 0
    %539 = vmatprep.subr.bf16.mxu0 0
    %540 = vmatpush1.bf16.msra.mxu0 0
    %541 = vmatprep.subr.bf16.mxu0 0
    %542 = vmatpush1.bf16.msra.mxu0 0
    %543 = vmatprep.subr.bf16.mxu0 0
    %544 = vmatpush1.bf16.msra.mxu0 0
    %545 = vmatprep.subr.bf16.mxu0 0
    %546 = vmatpush1.bf16.msra.mxu0 0
    %547 = vmatprep.subr.bf16.mxu0 0
    %548 = vmatpush1.bf16.msra.mxu0 0
    %549 = vmatprep.subr.bf16.mxu0 0
    %550 = vmatpush1.bf16.msra.mxu0 0
    %551 = vmatprep.subr.bf16.mxu0 0
    %552 = vmatpush1.bf16.msra.mxu0 0
    %553 = vmatprep.subr.bf16.mxu0 0
    %554 = vmatpush1.bf16.msra.mxu0 0
    %555 = vmatprep.mubr.bf16.mxu0 0
    %556 = vmatmul.mubr.bf16.gmra.mrb[0].mxu0 %v521
    %v557 = vpop.f32.mrb[0].mxu0
    %v558 = vadd.f32 0.0, %v557
    %v559 = vpop.f32.mrb[0].mxu0
    %v560 = vpop.f32.mrb[0].mxu0
    %v561 = vpop.f32.mrb[0].mxu0
    %562 = vdwg.mxu0
    %v563 = vadd.f32 %v355, %v558
    %v564 = vtanh.pop %v563
    %v565 = vadd.f32 %v564, 1.0
    %v566 = vmul.f32 %v565, 0.5
    %v567 = vmul.f32 %v566, %v509
    %569 = vrot.lane.b32.xlu0 %v564, 96
    %v570 = vpop.permute.xlu0 %569
    %v572 = vmul.f32 %v566, %v570
    %574 = vrot.lane.b32.xlu0 %v572, 16
    %v575 = vpop.permute.xlu0 %574
    %v577 = vadd.f32 %v567, %v575
    %v578 = vtanh.pop %v577
    %580 = vrot.lane.b32.xlu0 %v578, 32
    %v581 = vpop.permute.xlu0 %580
    %v583 = vmul.f32 %v566, %v581
    %v584 = vpack.c.bf16 %v583, %v583
    %586 = vrot.lane.b32.xlu0 %v584, 80
    %v587 = vpop.permute.xlu0 %586
    %v589 = vsel %vm383, %v587, 0
    %591 = vmatprep.subr.bf16.mxu0 0
    %592 = vmatpush1.bf16.msra.mxu0 %v381
    %593 = vmatprep.subr.bf16.mxu0 0
    %594 = vmatpush1.bf16.msra.mxu0 0
    %595 = vmatprep.subr.bf16.mxu0 0
    %596 = vmatpush1.bf16.msra.mxu0 0
    %597 = vmatprep.subr.bf16.mxu0 0
    %598 = vmatpush1.bf16.msra.mxu0 0
    %599 = vmatprep.subr.bf16.mxu0 0
    %600 = vmatpush1.bf16.msra.mxu0 0
    %601 = vmatprep.subr.bf16.mxu0 0
    %602 = vmatpush1.bf16.msra.mxu0 0
    %603 = vmatprep.subr.bf16.mxu0 0
    %604 = vmatpush1.bf16.msra.mxu0 0
    %605 = vmatprep.subr.bf16.mxu0 0
    %606 = vmatpush1.bf16.msra.mxu0 0
    %607 = vmatprep.subr.bf16.mxu0 0
    %608 = vmatpush1.bf16.msra.mxu0 0
    %609 = vmatprep.subr.bf16.mxu0 0
    %610 = vmatpush1.bf16.msra.mxu0 0
    %611 = vmatprep.subr.bf16.mxu0 0
    %612 = vmatpush1.bf16.msra.mxu0 0
    %613 = vmatprep.subr.bf16.mxu0 0
    %614 = vmatpush1.bf16.msra.mxu0 0
    %615 = vmatprep.subr.bf16.mxu0 0
    %616 = vmatpush1.bf16.msra.mxu0 0
    %617 = vmatprep.subr.bf16.mxu0 0
    %618 = vmatpush1.bf16.msra.mxu0 0
    %619 = vmatprep.subr.bf16.mxu0 0
    %620 = vmatpush1.bf16.msra.mxu0 0
    %621 = vmatprep.subr.bf16.mxu0 0
    %622 = vmatpush1.bf16.msra.mxu0 0
    %623 = vmatprep.mubr.bf16.mxu0 0
    %624 = vmatmul.mubr.bf16.gmra.mrb[0].mxu0 %v589
    %v625 = vpop.f32.mrb[0].mxu0
    %v626 = vadd.f32 0.0, %v625
    %v627 = vpop.f32.mrb[0].mxu0
    %v628 = vpop.f32.mrb[0].mxu0
    %v629 = vpop.f32.mrb[0].mxu0
    %630 = vdwg.mxu0
    %v631 = vadd.f32 %v358, %v626
    %v632 = vtanh.pop %v631
    %v633 = vadd.f32 %v632, 1.0
    %v634 = vmul.f32 %v633, 0.5
    %v635 = vmul.f32 %v634, %v577
    %637 = vrot.lane.b32.xlu0 %v632, 96
    %v638 = vpop.permute.xlu0 %637
    %v640 = vmul.f32 %v634, %v638
    %642 = vrot.lane.b32.xlu0 %v640, 16
    %v643 = vpop.permute.xlu0 %642
    %v645 = vadd.f32 %v635, %v643
    %v646 = vtanh.pop %v645
    %648 = vrot.lane.b32.xlu0 %v646, 32
    %v649 = vpop.permute.xlu0 %648
    %v651 = vmul.f32 %v634, %v649
    %v652 = vpack.c.bf16 %v651, %v651
    %654 = vrot.lane.b32.xlu0 %v652, 80
    %v655 = vpop.permute.xlu0 %654
    %v657 = vsel %vm383, %v655, 0
    %659 = vmatprep.subr.bf16.mxu0 0
    %660 = vmatpush1.bf16.msra.mxu0 %v381
    %661 = vmatprep.subr.bf16.mxu0 0
    %662 = vmatpush1.bf16.msra.mxu0 0
    %663 = vmatprep.subr.bf16.mxu0 0
    %664 = vmatpush1.bf16.msra.mxu0 0
    %665 = vmatprep.subr.bf16.mxu0 0
    %666 = vmatpush1.bf16.msra.mxu0 0
    %667 = vmatprep.subr.bf16.mxu0 0
    %668 = vmatpush1.bf16.msra.mxu0 0
    %669 = vmatprep.subr.bf16.mxu0 0
    %670 = vmatpush1.bf16.msra.mxu0 0
    %671 = vmatprep.subr.bf16.mxu0 0
    %672 = vmatpush1.bf16.msra.mxu0 0
    %673 = vmatprep.subr.bf16.mxu0 0
    %674 = vmatpush1.bf16.msra.mxu0 0
    %675 = vmatprep.subr.bf16.mxu0 0
    %676 = vmatpush1.bf16.msra.mxu0 0
    %677 = vmatprep.subr.bf16.mxu0 0
    %678 = vmatpush1.bf16.msra.mxu0 0
    %679 = vmatprep.subr.bf16.mxu0 0
    %680 = vmatpush1.bf16.msra.mxu0 0
    %681 = vmatprep.subr.bf16.mxu0 0
    %682 = vmatpush1.bf16.msra.mxu0 0
    %683 = vmatprep.subr.bf16.mxu0 0
    %684 = vmatpush1.bf16.msra.mxu0 0
    %685 = vmatprep.subr.bf16.mxu0 0
    %686 = vmatpush1.bf16.msra.mxu0 0
    %687 = vmatprep.subr.bf16.mxu0 0
    %688 = vmatpush1.bf16.msra.mxu0 0
    %689 = vmatprep.subr.bf16.mxu0 0
    %690 = vmatpush1.bf16.msra.mxu0 0
    %691 = vmatprep.mubr.bf16.mxu0 0
    %692 = vmatmul.mubr.bf16.gmra.mrb[0].mxu0 %v657
    %v693 = vpop.f32.mrb[0].mxu0
    %v694 = vadd.f32 0.0, %v693
    %v695 = vpop.f32.mrb[0].mxu0
    %v696 = vpop.f32.mrb[0].mxu0
    %v697 = vpop.f32.mrb[0].mxu0
    %698 = vdwg.mxu0
    %v699 = vadd.f32 %v363, %v694
    %v700 = vtanh.pop %v699
    %v701 = vadd.f32 %v700, 1.0
    %v702 = vmul.f32 %v701, 0.5
    %v703 = vmul.f32 %v702, %v645
    %705 = vrot.lane.b32.xlu0 %v700, 96
    %v706 = vpop.permute.xlu0 %705
    %v708 = vmul.f32 %v702, %v706
    %710 = vrot.lane.b32.xlu0 %v708, 16
    %v711 = vpop.permute.xlu0 %710
    %v713 = vadd.f32 %v703, %v711
    %v714 = vtanh.pop %v713
    %716 = vrot.lane.b32.xlu0 %v714, 32
    %v717 = vpop.permute.xlu0 %716
    %v719 = vmul.f32 %v702, %v717
    %v720 = vpack.c.bf16 %v719, %v719
    %722 = vrot.lane.b32.xlu0 %v720, 80
    %v723 = vpop.permute.xlu0 %722
    %v725 = vsel %vm383, %v723, 0
    %727 = vmatprep.subr.bf16.mxu0 0
    %728 = vmatpush1.bf16.msra.mxu0 %v381
    %729 = vmatprep.subr.bf16.mxu0 0
    %730 = vmatpush1.bf16.msra.mxu0 0
    %731 = vmatprep.subr.bf16.mxu0 0
    %732 = vmatpush1.bf16.msra.mxu0 0
    %733 = vmatprep.subr.bf16.mxu0 0
    %734 = vmatpush1.bf16.msra.mxu0 0
    %735 = vmatprep.subr.bf16.mxu0 0
    %736 = vmatpush1.bf16.msra.mxu0 0
    %737 = vmatprep.subr.bf16.mxu0 0
    %738 = vmatpush1.bf16.msra.mxu0 0
    %739 = vmatprep.subr.bf16.mxu0 0
    %740 = vmatpush1.bf16.msra.mxu0 0
    %741 = vmatprep.subr.bf16.mxu0 0
    %742 = vmatpush1.bf16.msra.mxu0 0
    %743 = vmatprep.subr.bf16.mxu0 0
    %744 = vmatpush1.bf16.msra.mxu0 0
    %745 = vmatprep.subr.bf16.mxu0 0
    %746 = vmatpush1.bf16.msra.mxu0 0
    %747 = vmatprep.subr.bf16.mxu0 0
    %748 = vmatpush1.bf16.msra.mxu0 0
    %749 = vmatprep.subr.bf16.mxu0 0
    %750 = vmatpush1.bf16.msra.mxu0 0
    %751 = vmatprep.subr.bf16.mxu0 0
    %752 = vmatpush1.bf16.msra.mxu0 0
    %753 = vmatprep.subr.bf16.mxu0 0
    %754 = vmatpush1.bf16.msra.mxu0 0
    %755 = vmatprep.subr.bf16.mxu0 0
    %756 = vmatpush1.bf16.msra.mxu0 0
    %757 = vmatprep.subr.bf16.mxu0 0
    %758 = vmatpush1.bf16.msra.mxu0 0
    %759 = vmatprep.mubr.bf16.mxu0 0
    %760 = vmatmul.mubr.bf16.gmra.mrb[0].mxu0 %v725
    %v761 = vpop.f32.mrb[0].mxu0
    %v762 = vadd.f32 0.0, %v761
    %v763 = vpop.f32.mrb[0].mxu0
    %v764 = vpop.f32.mrb[0].mxu0
    %v765 = vpop.f32.mrb[0].mxu0
    %766 = vdwg.mxu0
    %v767 = vadd.f32 %v366, %v762
    %v768 = vtanh.pop %v767
    %v769 = vadd.f32 %v768, 1.0
    %v770 = vmul.f32 %v769, 0.5
    %v771 = vmul.f32 %v770, %v713
    %773 = vrot.lane.b32.xlu0 %v768, 96
    %v774 = vpop.permute.xlu0 %773
    %v776 = vmul.f32 %v770, %v774
    %778 = vrot.lane.b32.xlu0 %v776, 16
    %v779 = vpop.permute.xlu0 %778
    %v781 = vadd.f32 %v771, %v779
    %v782 = vtanh.pop %v781
    %784 = vrot.lane.b32.xlu0 %v782, 32
    %v785 = vpop.permute.xlu0 %784
    %v787 = vmul.f32 %v770, %v785
    %v788 = vpack.c.bf16 %v787, %v787
    %790 = vrot.lane.b32.xlu0 %v788, 80
    %v791 = vpop.permute.xlu0 %790
    %v793 = vsel %vm383, %v791, 0
    %795 = vmatprep.subr.bf16.mxu0 0
    %796 = vmatpush1.bf16.msra.mxu0 %v381
    %797 = vmatprep.subr.bf16.mxu0 0
    %798 = vmatpush1.bf16.msra.mxu0 0
    %799 = vmatprep.subr.bf16.mxu0 0
    %800 = vmatpush1.bf16.msra.mxu0 0
    %801 = vmatprep.subr.bf16.mxu0 0
    %802 = vmatpush1.bf16.msra.mxu0 0
    %803 = vmatprep.subr.bf16.mxu0 0
    %804 = vmatpush1.bf16.msra.mxu0 0
    %805 = vmatprep.subr.bf16.mxu0 0
    %806 = vmatpush1.bf16.msra.mxu0 0
    %807 = vmatprep.subr.bf16.mxu0 0
    %808 = vmatpush1.bf16.msra.mxu0 0
    %809 = vmatprep.subr.bf16.mxu0 0
    %810 = vmatpush1.bf16.msra.mxu0 0
    %811 = vmatprep.subr.bf16.mxu0 0
    %812 = vmatpush1.bf16.msra.mxu0 0
    %813 = vmatprep.subr.bf16.mxu0 0
    %814 = vmatpush1.bf16.msra.mxu0 0
    %815 = vmatprep.subr.bf16.mxu0 0
    %816 = vmatpush1.bf16.msra.mxu0 0
    %817 = vmatprep.subr.bf16.mxu0 0
    %818 = vmatpush1.bf16.msra.mxu0 0
    %819 = vmatprep.subr.bf16.mxu0 0
    %820 = vmatpush1.bf16.msra.mxu0 0
    %821 = vmatprep.subr.bf16.mxu0 0
    %822 = vmatpush1.bf16.msra.mxu0 0
    %823 = vmatprep.subr.bf16.mxu0 0
    %824 = vmatpush1.bf16.msra.mxu0 0
    %825 = vmatprep.subr.bf16.mxu0 0
    %826 = vmatpush1.bf16.msra.mxu0 0
    %827 = vmatprep.mubr.bf16.mxu0 0
    %828 = vmatmul.mubr.bf16.gmra.mrb[0].mxu0 %v793
    %v829 = vpop.f32.mrb[0].mxu0
    %v830 = vadd.f32 0.0, %v829
    %v831 = vpop.f32.mrb[0].mxu0
    %v832 = vpop.f32.mrb[0].mxu0
    %v833 = vpop.f32.mrb[0].mxu0
    %834 = vdwg.mxu0
    %v835 = vadd.f32 %v371, %v830
    %v836 = vtanh.pop %v835
    %v837 = vadd.f32 %v836, 1.0
    %v838 = vmul.f32 %v837, 0.5
    %v839 = vmul.f32 %v838, %v781
    %841 = vrot.lane.b32.xlu0 %v836, 96
    %v842 = vpop.permute.xlu0 %841
    %v844 = vmul.f32 %v838, %v842
    %846 = vrot.lane.b32.xlu0 %v844, 16
    %v847 = vpop.permute.xlu0 %846
    %v849 = vadd.f32 %v839, %v847
    %v850 = vtanh.pop %v849
    %852 = vrot.lane.b32.xlu0 %v850, 32
    %v853 = vpop.permute.xlu0 %852
    %v855 = vmul.f32 %v838, %v853
    %v856 = vpack.c.bf16 %v855, %v855
    %858 = vrot.lane.b32.xlu0 %v856, 80
    %v859 = vpop.permute.xlu0 %858
    %v861 = vsel %vm383, %v859, 0
    %863 = vmatprep.subr.bf16.mxu0 0
    %864 = vmatpush1.bf16.msra.mxu0 %v381
    %865 = vmatprep.subr.bf16.mxu0 0
    %866 = vmatpush1.bf16.msra.mxu0 0
    %867 = vmatprep.subr.bf16.mxu0 0
    %868 = vmatpush1.bf16.msra.mxu0 0
    %869 = vmatprep.subr.bf16.mxu0 0
    %870 = vmatpush1.bf16.msra.mxu0 0
    %871 = vmatprep.subr.bf16.mxu0 0
    %872 = vmatpush1.bf16.msra.mxu0 0
    %873 = vmatprep.subr.bf16.mxu0 0
    %874 = vmatpush1.bf16.msra.mxu0 0
    %875 = vmatprep.subr.bf16.mxu0 0
    %876 = vmatpush1.bf16.msra.mxu0 0
    %877 = vmatprep.subr.bf16.mxu0 0
    %878 = vmatpush1.bf16.msra.mxu0 0
    %879 = vmatprep.subr.bf16.mxu0 0
    %880 = vmatpush1.bf16.msra.mxu0 0
    %881 = vmatprep.subr.bf16.mxu0 0
    %882 = vmatpush1.bf16.msra.mxu0 0
    %883 = vmatprep.subr.bf16.mxu0 0
    %884 = vmatpush1.bf16.msra.mxu0 0
    %885 = vmatprep.subr.bf16.mxu0 0
    %886 = vmatpush1.bf16.msra.mxu0 0
    %887 = vmatprep.subr.bf16.mxu0 0
    %888 = vmatpush1.bf16.msra.mxu0 0
    %889 = vmatprep.subr.bf16.mxu0 0
    %890 = vmatpush1.bf16.msra.mxu0 0
    %891 = vmatprep.subr.bf16.mxu0 0
    %892 = vmatpush1.bf16.msra.mxu0 0
    %893 = vmatprep.subr.bf16.mxu0 0
    %894 = vmatpush1.bf16.msra.mxu0 0
    %895 = vmatprep.mubr.bf16.mxu0 0
    %896 = vmatmul.mubr.bf16.gmra.mrb[0].mxu0 %v861
    %v897 = vpop.f32.mrb[0].mxu0
    %v898 = vadd.f32 0.0, %v897
    %v899 = vpop.f32.mrb[0].mxu0
    %v900 = vpop.f32.mrb[0].mxu0
    %v901 = vpop.f32.mrb[0].mxu0
    %902 = vdwg.mxu0
    %v903 = vadd.f32 %v374, %v898
    %v904 = vtanh.pop %v903
    %v905 = vadd.f32 %v904, 1.0
    %v906 = vmul.f32 %v905, 0.5
    %v907 = vmul.f32 %v906, %v849
    %909 = vrot.lane.b32.xlu0 %v904, 96
    %v910 = vpop.permute.xlu0 %909
    %v912 = vmul.f32 %v906, %v910
    %914 = vrot.lane.b32.xlu0 %v912, 16
    %v915 = vpop.permute.xlu0 %914
    %v917 = vadd.f32 %v907, %v915
    %v918 = vtanh.pop %v917
    %920 = vrot.lane.b32.xlu0 %v918, 32
    %v921 = vpop.permute.xlu0 %920
    %v923 = vmul.f32 %v906, %v921
    %v924 = vtanh.pop %v374
    %v925 = vadd.f32 %v924, 1.0
    %v926 = vmul.f32 %v925, 0.5
    %v927 = vmul.f32 %v926, 0.0
    %929 = vrot.lane.b32.xlu0 %v924, 96
    %v930 = vpop.permute.xlu0 %929
    %v932 = vmul.f32 %v926, %v930
    %934 = vrot.lane.b32.xlu0 %v932, 16
    %v935 = vpop.permute.xlu0 %934
    %v937 = vadd.f32 %v927, %v935
    %v938 = vtanh.pop %v937
    %940 = vrot.lane.b32.xlu0 %v938, 32
    %v941 = vpop.permute.xlu0 %940
    %v943 = vmul.f32 %v926, %v941
    %v944 = vpack.c.bf16 %v923, %v923
    %v945 = vld [vmem:[%s5] sm:$0xf]
    %v946 = vld [vmem:[%s5 + $0x4] sm:$0xf]
    %v947 = vpack.c.bf16 %v943, %v943
    %v948 = vld [vmem:[%s6] sm:$0xf]
    %v949 = vld [vmem:[%s6 + $0x4] sm:$0xf]
    %951 = vrot.lane.b32.xlu0 %v947, 16
    %v952 = vpop.permute.xlu0 %951
    %v955 = vunpack.c.l.b16 %v948
    %v956 = vunpack.c.l.b16 %v949
    %v957 = vpack.c.b16 %v956, %v955
    %v960 = vsel %vm383, %v952, 0
    %962 = vmatprep.subr.bf16.mxu0 0
    %963 = vmatpush1.bf16.msra.mxu0 %v957
    %964 = vmatprep.subr.bf16.mxu0 0
    %965 = vmatpush1.bf16.msra.mxu0 0
    %966 = vmatprep.subr.bf16.mxu0 0
    %967 = vmatpush1.bf16.msra.mxu0 0
    %968 = vmatprep.subr.bf16.mxu0 0
    %969 = vmatpush1.bf16.msra.mxu0 0
    %970 = vmatprep.subr.bf16.mxu0 0
    %971 = vmatpush1.bf16.msra.mxu0 0
    %972 = vmatprep.subr.bf16.mxu0 0
    %973 = vmatpush1.bf16.msra.mxu0 0
    %974 = vmatprep.subr.bf16.mxu0 0
    %975 = vmatpush1.bf16.msra.mxu0 0
    %976 = vmatprep.subr.bf16.mxu0 0
    %977 = vmatpush1.bf16.msra.mxu0 0
    %978 = vmatprep.subr.bf16.mxu0 0
    %979 = vmatpush1.bf16.msra.mxu0 0
    %980 = vmatprep.subr.bf16.mxu0 0
    %981 = vmatpush1.bf16.msra.mxu0 0
    %982 = vmatprep.subr.bf16.mxu0 0
    %983 = vmatpush1.bf16.msra.mxu0 0
    %984 = vmatprep.subr.bf16.mxu0 0
    %985 = vmatpush1.bf16.msra.mxu0 0
    %986 = vmatprep.subr.bf16.mxu0 0
    %987 = vmatpush1.bf16.msra.mxu0 0
    %988 = vmatprep.subr.bf16.mxu0 0
    %989 = vmatpush1.bf16.msra.mxu0 0
    %990 = vmatprep.subr.bf16.mxu0 0
    %991 = vmatpush1.bf16.msra.mxu0 0
    %992 = vmatprep.subr.bf16.mxu0 0
    %993 = vmatpush1.bf16.msra.mxu0 0
    %994 = vmatprep.mubr.bf16.mxu0 0
    %995 = vmatmul.mubr.bf16.gmra.mrb[0].mxu0 %v960
    %v996 = vpop.f32.mrb[0].mxu0
    %v997 = vadd.f32 0.0, %v996
    %v998 = vpop.f32.mrb[0].mxu0
    %v999 = vpop.f32.mrb[0].mxu0
    %v1000 = vpop.f32.mrb[0].mxu0
    %1001 = vdwg.mxu0
    %1003 = vrot.lane.b32.xlu0 %v944, 80
    %v1004 = vpop.permute.xlu0 %1003
    %v1007 = vunpack.c.l.b16 %v945
    %v1008 = vunpack.c.l.b16 %v946
    %v1009 = vpack.c.b16 %v1008, %v1007
    %v1012 = vsel %vm383, %v1004, 0
    %1014 = vmatprep.subr.bf16.mxu0 0
    %1015 = vmatpush1.bf16.msra.mxu0 %v1009
    %1016 = vmatprep.subr.bf16.mxu0 0
    %1017 = vmatpush1.bf16.msra.mxu0 0
    %1018 = vmatprep.subr.bf16.mxu0 0
    %1019 = vmatpush1.bf16.msra.mxu0 0
    %1020 = vmatprep.subr.bf16.mxu0 0
    %1021 = vmatpush1.bf16.msra.mxu0 0
    %1022 = vmatprep.subr.bf16.mxu0 0
    %1023 = vmatpush1.bf16.msra.mxu0 0
    %1024 = vmatprep.subr.bf16.mxu0 0
    %1025 = vmatpush1.bf16.msra.mxu0 0
    %1026 = vmatprep.subr.bf16.mxu0 0
    %1027 = vmatpush1.bf16.msra.mxu0 0
    %1028 = vmatprep.subr.bf16.mxu0 0
    %1029 = vmatpush1.bf16.msra.mxu0 0
    %1030 = vmatprep.subr.bf16.mxu0 0
    %1031 = vmatpush1.bf16.msra.mxu0 0
    %1032 = vmatprep.subr.bf16.mxu0 0
    %1033 = vmatpush1.bf16.msra.mxu0 0
    %1034 = vmatprep.subr.bf16.mxu0 0
    %1035 = vmatpush1.bf16.msra.mxu0 0
    %1036 = vmatprep.subr.bf16.mxu0 0
    %1037 = vmatpush1.bf16.msra.mxu0 0
    %1038 = vmatprep.subr.bf16.mxu0 0
    %1039 = vmatpush1.bf16.msra.mxu0 0
    %1040 = vmatprep.subr.bf16.mxu0 0
    %1041 = vmatpush1.bf16.msra.mxu0 0
    %1042 = vmatprep.subr.bf16.mxu0 0
    %1043 = vmatpush1.bf16.msra.mxu0 0
    %1044 = vmatprep.subr.bf16.mxu0 0
    %1045 = vmatpush1.bf16.msra.mxu0 0
    %1046 = vmatprep.mubr.bf16.mxu0 0
    %1047 = vmatmul.mubr.bf16.gmra.mrb[0].mxu0 %v1012
    %v1048 = vpop.f32.mrb[0].mxu0
    %v1049 = vadd.f32 %v997, %v1048
    %v1050 = vpop.f32.mrb[0].mxu0
    %v1051 = vpop.f32.mrb[0].mxu0
    %v1052 = vpop.f32.mrb[0].mxu0
    %1053 = vdwg.mxu0
    %v1054 = vld [vmem:[%s7] sm:$0x1]
    %v1056 = vlaneseq
    %v1057 = vshrl.u32 %v1056, 7
    %v1058 = vsub.s32 0, %v1057
    %v1059 = vrot.slane %v1054, %v1058
    %v1061 = vadd.f32 %v1049, %v1059
    %vm1062 = vcmask 64512
    %v1063 = vsel %vm1062, %v1061, -inf
    %1064 = vmax.xlane.f32.xlu0 %v1063
    %v1065 = vpop.xlane.xlu0 %1064
    %v1066 = vsub.f32 %v1061, %v1065
    %v1067 = vmul.f32 %v1066, 1.442695
    %v1068 = vpow.pop %v1067
    %v1069 = vsel %vm1062, %v1068, 0.0
    %1070 = vadd.xlane.f32.xlu0 %v1069
    %v1071 = vpop.xlane.xlu0 %1070
    %v1072 = vlog2.pop %v1071
    %v1073 = vmul.f32 %v1072, 0.6931472
    %v1074 = vsub.f32 %v1066, %v1073
    %vm1075 = vcmask 58368
    %1076 = vst.msk [vmem:[#allocation5] sm:$0x3] %vm1075, %v1074
    // Predicated region
    $region30: #{dct_forward.1} parent=1 // pred_check
      _
    $region31: #{dct_forward.1} parent=1 // pred_check_branch
      %1078 = sbr.rel (0) target = $region33
    $region32: #{dct_forward.1} parent=1 // pred_region
      %s1080 = ssub.s32 32, 32
      %1081 = vsyncadd [#allocation6], %s1080
      %s1083 = sshll.u32 [#allocation5], 4
      %s1084 = int_to_ptr.vmem [resolvable:$true] %s1083
      %1086 = dma.vmem_to_hbm [thread:$0]  %s1084, 32, %s8, [#allocation6]
    $region33: #{dct_forward.1} parent=1 // pred_fallthru
      _
    // Predicated region
    $region34: #{dct_forward.1} parent=1 // pred_check
      _
    $region35: #{dct_forward.1} parent=1 // pred_check_branch
      %1088 = sbr.rel (0) target = $region37
    $region36: #{dct_forward.1} parent=1 // pred_region
      %1089 = dma.done [#allocation6], 32
    $region37: #{dct_forward.1} parent=1 // pred_fallthru
      _
    %1090 = vsyncpa [#allocation6], 1

</llo_original>
